<compile_context>
chip_gen: v7x
topology: tpu7x:2x2x1
jax: 0.10.0
libtpu: 0.0.40
codegen_flags: <defaults>
</compile_context>

<pallas_src>
import functools

import jax
import jax.numpy as jnp
from jax.experimental import pallas as pl
from jax.experimental.pallas import tpu as pltpu


LANE = 128  # lane alignment for node / feature / class dims


# ------------------------------ small helpers --------------------------------
def _rup(v, m):
    return ((v + m - 1) // m) * m


def _pad2(a, rows, cols):
    return jnp.pad(a, ((0, rows - a.shape[0]), (0, cols - a.shape[1])))


def _pad_bias(b, d_pad):
    b = jnp.asarray(b, jnp.float32).reshape(1, -1)
    return _pad2(b, 1, d_pad)


def _vmem_budget():
    """Per-generation VMEM budget (bytes) with headroom for double buffering."""
    cap = 64 * 1024 * 1024  # conservative default (v7x physical VMEM)
    try:
        info = pltpu.get_tpu_info()
        cap = int(getattr(info, "vmem_capacity_bytes", cap) or cap)
    except Exception:
        pass
    return int(cap * 0.6)


def _pick_row_tile(n_rows):
    """Largest row tile <= 1024 dividing n_rows while leaving >= 2 tiles
    (so the 'parallel' row axis can shard across v7x's two TensorCores)."""
    for t in (1024, 512, 256, 128):
        if n_rows % t == 0 and n_rows // t >= 2:
            return t
    return n_rows  # tiny graph: single tile


def _pick_k_tile(k_dim, max_single=1024):
    """Contraction tile: single step when small, else largest 512/256/128."""
    if k_dim <= max_single:
        return k_dim
    for t in (512, 256, 128):
        if k_dim % t == 0:
            return t
    return 128


# --------------------------------- kernels -----------------------------------
def _mm_oneshot_kernel(x_ref, w_ref, o_ref):
    """o = x @ w; single K step -> no accumulator scratch, direct store."""
    o_ref[...] = jnp.dot(x_ref[...], w_ref[...],
                         preferred_element_type=jnp.float32).astype(o_ref.dtype)


def _mm_acc_kernel(x_ref, w_ref, o_ref, acc_ref):
    """o[i] = sum_k x[i,k] @ w[k]; grid = (rows, K); K last / arbitrary."""
    k = pl.program_id(1)

    @pl.when(k == 0)
    def _():
        acc_ref[...] = jnp.zeros_like(acc_ref)

    acc_ref[...] += jnp.dot(x_ref[...], w_ref[...],
                            preferred_element_type=jnp.float32)

    @pl.when(k == pl.num_programs(1) - 1)
    def _():
        o_ref[...] = acc_ref[...].astype(o_ref.dtype)


def _finalize(z, activation, valid_cols, out_dtype):
    """Fused bias-free epilogue: ReLU or masked log_softmax over valid lanes."""
    if activation == "relu":
        return jnp.maximum(z, 0.0).astype(out_dtype)
    lane = jax.lax.broadcasted_iota(jnp.int32, z.shape, 1)
    zm = jnp.where(lane < valid_cols, z, -jnp.inf)
    mx = jnp.max(zm, axis=1, keepdims=True)
    s = zm - mx
    lse = jnp.log(jnp.sum(jnp.exp(s), axis=1, keepdims=True))
    out = jnp.where(lane < valid_cols, s - lse, 0.0)
    return out.astype(out_dtype)


def _prop_oneshot_kernel(a_ref, m_ref, b_ref, o_ref, *, activation, valid_cols):
    """o = act(A_stripe @ M + b); A stripe full-width, M resident, no K loop."""
    z = jnp.dot(a_ref[...], m_ref[...],
                preferred_element_type=jnp.float32) + b_ref[...]
    o_ref[...] = _finalize(z, activation, valid_cols, o_ref.dtype)


def _prop_acc_kernel(a_ref, m_ref, b_ref, o_ref, acc_ref, *,
                     activation, valid_cols, tk, resident_m):
    """o[i] = act(sum_k A[i,k] @ M[k] + b); grid = (rows, K-over-nodes)."""
    k = pl.program_id(1)

    @pl.when(k == 0)
    def _():
        acc_ref[...] = jnp.zeros_like(acc_ref)

    if resident_m:
        m_tile = m_ref[pl.ds(pl.multiple_of(k * tk, tk), tk), :]
    else:
        m_tile = m_ref[...]
    acc_ref[...] += jnp.dot(a_ref[...], m_tile,
                            preferred_element_type=jnp.float32)

    @pl.when(k == pl.num_programs(1) - 1)
    def _():
        z = acc_ref[...] + b_ref[...]
        o_ref[...] = _finalize(z, activation, valid_cols, o_ref.dtype)


# ------------------------------ pallas wrappers -------------------------------
def _dense_matmul(x, w, out_dtype, budget):
    """XW = X @ W, row-tiled; W resident in VMEM (fetched once)."""
    m_dim, k_dim = x.shape
    n_dim = w.shape[1]
    tm = _pick_row_tile(m_dim)
    tk = _pick_k_tile(k_dim)

    if tk == k_dim:  # single K step: no scratch, no init, direct MXU -> store
        return pl.pallas_call(
            _mm_oneshot_kernel,
            out_shape=jax.ShapeDtypeStruct((m_dim, n_dim), out_dtype),
            grid=(m_dim // tm,),
            in_specs=[
                pl.BlockSpec((tm, k_dim), lambda i: (i, 0)),
                pl.BlockSpec((k_dim, n_dim), lambda i: (0, 0)),   # W resident
            ],
            out_specs=pl.BlockSpec((tm, n_dim), lambda i: (i, 0)),
            compiler_params=pltpu.CompilerParams(
                dimension_semantics=("parallel",),
                vmem_limit_bytes=budget),
        )(x, w)

    return pl.pallas_call(
        _mm_acc_kernel,
        out_shape=jax.ShapeDtypeStruct((m_dim, n_dim), out_dtype),
        grid=(m_dim // tm, k_dim // tk),
        in_specs=[
            pl.BlockSpec((tm, tk), lambda i, k: (i, k)),
            pl.BlockSpec((tk, n_dim), lambda i, k: (k, 0)),
        ],
        out_specs=pl.BlockSpec((tm, n_dim), lambda i, k: (i, 0)),
        scratch_shapes=[pltpu.VMEM((tm, n_dim), jnp.float32)],
        compiler_params=pltpu.CompilerParams(
            dimension_semantics=("parallel", "arbitrary"),
            vmem_limit_bytes=budget),
    )(x, w)


def _propagate(a, m, b, *, activation, valid_cols, out_dtype, budget):
    """act(A_hat @ M + b), row-tiled over A_hat, bias/activation fused."""
    n_pad = a.shape[0]
    d = m.shape[1]
    a_bytes = a.dtype.itemsize
    m_bytes = m.dtype.itemsize
    o_bytes = jnp.dtype(out_dtype).itemsize

    tm = _pick_row_tile(n_pad)
    rows = n_pad // tm

    m_res = n_pad * d * m_bytes            # resident M, fetched once
    out_buf = 2 * tm * d * o_bytes         # double-buffered output
    acc = tm * d * 4
    bias = d * 4

    # Mode 1: one-shot — full-width A row stripe, resident M, no K loop.
    stripe = 2 * tm * n_pad * a_bytes      # double-buffered bf16 A stripe
    stripe_f32 = tm * n_pad * 4            # f32 promotion of the stripe at dot
    if stripe + stripe_f32 + m_res + out_buf + bias <= budget:
        kern = functools.partial(_prop_oneshot_kernel,
                                 activation=activation, valid_cols=valid_cols)
        return pl.pallas_call(
            kern,
            out_shape=jax.ShapeDtypeStruct((n_pad, d), out_dtype),
            grid=(rows,),
            in_specs=[
                pl.BlockSpec((tm, n_pad), lambda i: (i, 0)),   # A row stripe
                pl.BlockSpec((n_pad, d), lambda i: (0, 0)),    # M resident
                pl.BlockSpec((1, d), lambda i: (0, 0)),        # bias resident
            ],
            out_specs=pl.BlockSpec((tm, d), lambda i: (i, 0)),
            compiler_params=pltpu.CompilerParams(
                dimension_semantics=("parallel",),
                vmem_limit_bytes=budget),
        )(a, m, b)

    # Mode 2: K-tiled accumulator; keep M resident when it fits, else stream.
    tk = _pick_k_tile(n_pad, max_single=512)
    a_tiles = 2 * tm * tk * a_bytes
    resident_m = (m_res + a_tiles + acc + out_buf + bias) <= budget
    kern = functools.partial(_prop_acc_kernel, activation=activation,
                             valid_cols=valid_cols, tk=tk, resident_m=resident_m)
    if resident_m:
        m_spec = pl.BlockSpec((n_pad, d), lambda i, k: (0, 0))     # fetched once
    else:
        m_spec = pl.BlockSpec((tk, d), lambda i, k: (k, 0))        # streamed
    return pl.pallas_call(
        kern,
        out_shape=jax.ShapeDtypeStruct((n_pad, d), out_dtype),
        grid=(rows, n_pad // tk),
        in_specs=[
            pl.BlockSpec((tm, tk), lambda i, k: (i, k)),
            m_spec,
            pl.BlockSpec((1, d), lambda i, k: (0, 0)),
        ],
        out_specs=pl.BlockSpec((tm, d), lambda i, k: (i, 0)),
        scratch_shapes=[pltpu.VMEM((tm, d), jnp.float32)],
        compiler_params=pltpu.CompilerParams(
            dimension_semantics=("parallel", "arbitrary"),
            vmem_limit_bytes=budget),
    )(a, m, b)


# ------------------------------ forward pass ----------------------------------
def prepare_gcn_inputs(a_hat, x, w1, b1, w2, b2):
    """One-time padding + dtype conversion (hoisted out of the forward pass).

    Only A_hat (the dominant HBM stream) is cast to bf16; X / weights /
    intermediates stay f32 to keep the numerics tight.
    """
    n, f = x.shape
    h_dim = w1.shape[1]
    c_dim = w2.shape[1]

    n_pad = _rup(max(n, LANE), LANE)
    f_pad = _rup(max(f, LANE), LANE)
    h_pad = _rup(max(h_dim, LANE), LANE)
    c_pad = _rup(max(c_dim, LANE), LANE)

    return dict(
        a=_pad2(jnp.asarray(a_hat, jnp.float32), n_pad, n_pad).astype(jnp.bfloat16),
        x=_pad2(jnp.asarray(x, jnp.float32), n_pad, f_pad),
        w1=_pad2(jnp.asarray(w1, jnp.float32), f_pad, h_pad),
        b1=_pad_bias(b1, h_pad),
        w2=_pad2(jnp.asarray(w2, jnp.float32), h_pad, c_pad),
        b2=_pad_bias(b2, c_pad),
        n=n, c=c_dim,
    )


@functools.partial(jax.jit, static_argnames=("n", "c"))
def gcn_forward_prepared(a, x, w1, b1, w2, b2, *, n, c):
    budget = _vmem_budget()

    # layer 1: h = relu(A_hat @ (X @ W1) + b1)
    xw1 = _dense_matmul(x, w1, jnp.float32, budget)                 # (n_pad, h_pad)
    h = _propagate(a, xw1, b1, activation="relu",
                   valid_cols=w1.shape[1], out_dtype=jnp.float32,
                   budget=budget)                                   # (n_pad, h_pad)

    # layer 2: out = log_softmax(A_hat @ (h @ W2) + b2) over the real classes
    hw2 = _dense_matmul(h, w2, jnp.float32, budget)                 # (n_pad, c_pad)
    z = _propagate(a, hw2, b2, activation="log_softmax",
                   valid_cols=c, out_dtype=jnp.float32,
                   budget=budget)                                   # (n_pad, c_pad)

    return z[:n, :c]


def gcn_forward(a_hat, x, w1, b1, w2, b2):
    """Convenience wrapper: prepares (pads/casts) then runs the forward."""
    p = prepare_gcn_inputs(a_hat, x, w1, b1, w2, b2)
    return gcn_forward_prepared(p["a"], p["x"], p["w1"], p["b1"], p["w2"],
                                p["b2"], n=p["n"], c=p["c"])


# -------------------------------- graph glue -----------------------------------
def normalized_adjacency(edge_index, num_nodes):
    """Dense D^-1/2 (A + I) D^-1/2 from a (2, E) edge_index (src -> dst)."""
    src, dst = edge_index[0], edge_index[1]
    a = jnp.zeros((num_nodes, num_nodes), jnp.float32).at[dst, src].add(1.0)
    # add self loops only where missing (PyG add_remaining_self_loops semantics)
    diag = jnp.diagonal(a)
    a = a + jnp.diag(jnp.where(diag > 0, 0.0, 1.0))
    deg = jnp.sum(a, axis=1)
    d_inv_sqrt = jnp.where(deg > 0, 1.0 / jnp.sqrt(deg), 0.0)
    return d_inv_sqrt[:, None] * a * d_inv_sqrt[None, :]


def glorot(key, shape):
    fan_in, fan_out = shape
    limit = jnp.sqrt(6.0 / (fan_in + fan_out))
    return jax.random.uniform(key, shape, jnp.float32, -limit, limit)


def gcn_reference(a, x, w1, b1, w2, b2):
    h = jnp.maximum(a @ (x @ w1) + jnp.reshape(b1, (1, -1)), 0.0)
    z = a @ (h @ w2) + jnp.reshape(b2, (1, -1))
    return jax.nn.log_softmax(z, axis=1)


if __name__ == "__main__":
    key = jax.random.PRNGKey(0)
    k_x, k_e, k_w1, k_w2 = jax.random.split(key, 4)

    # Small synthetic graph: N nodes, F input features, H hidden, C classes.
    N, F, H, C = 200, 48, 64, 8
    E = 800

    x = jax.random.normal(k_x, (N, F), jnp.float32)
    edge_index = jax.random.randint(k_e, (2, E), 0, N, jnp.int32)
    a_hat = normalized_adjacency(edge_index, N)

    # GCNConv params: weight (in, out) Glorot, bias zeros (PyG defaults).
    w1 = glorot(k_w1, (F, H))
    b1 = jnp.zeros((H,), jnp.float32)
    w2 = glorot(k_w2, (H, C))
    b2 = jnp.zeros((C,), jnp.float32)

    # One-time preprocessing (pad + bf16 cast of A_hat) hoisted out of forward.
    prep = prepare_gcn_inputs(a_hat, x, w1, b1, w2, b2)
    out = jax.block_until_ready(
        gcn_forward_prepared(prep["a"], prep["x"], prep["w1"], prep["b1"],
                             prep["w2"], prep["b2"], n=prep["n"], c=prep["c"]))

    assert out.shape == (N, C)
    # log_softmax rows sum to 1 in prob space (computed in f32 inside the kernel).
    assert jnp.allclose(jnp.sum(jnp.exp(out), axis=1), 1.0, atol=1e-3)
    # Match a plain-JAX f32 reference (only A_hat is bf16 -> tight tolerance).
    ref = gcn_reference(a_hat, x, w1, b1, w2, b2)
    assert jnp.allclose(out, ref, atol=5e-2), float(jnp.max(jnp.abs(out - ref)))

    print("KERNEL_OK")
</pallas_src>

<mosaic_0001>
module attributes {stable_mosaic.version = 11 : i64} {
  func.func @_mm_oneshot_kernel(%arg0: i32, %arg1: memref<128x128xf32, #tpu.memory_space<vmem>>, %arg2: memref<128x128xf32, #tpu.memory_space<vmem>>, %arg3: memref<128x128xf32, #tpu.memory_space<vmem>>) attributes {dimension_semantics = [#tpu.dimension_semantics<parallel>], iteration_bounds = array<i64: 2>, scalar_prefetch = 0 : i64, scratch_operands = 0 : i64, tpu.core_type = #tpu.core_type<tc>, window_params = [{transform_indices = @transform_0, window_bounds = array<i64: 128, 128>}, {pipeline_mode = #tpu.pipeline_mode<synchronous>, transform_indices = @transform_1, window_bounds = array<i64: 128, 128>}, {transform_indices = @transform_2, window_bounds = array<i64: 128, 128>}]} {
    %c0 = arith.constant 0 : index
    %c0_0 = arith.constant 0 : index
    %0 = vector.load %arg1[%c0, %c0_0] : memref<128x128xf32, #tpu.memory_space<vmem>>, vector<128x128xf32>
    %c0_1 = arith.constant 0 : index
    %c0_2 = arith.constant 0 : index
    %1 = vector.load %arg2[%c0_1, %c0_2] : memref<128x128xf32, #tpu.memory_space<vmem>>, vector<128x128xf32>
    %cst = arith.constant dense<0.000000e+00> : vector<128x128xf32>
    %2 = tpu.matmul %0, %1, %cst {dimension_numbers = #tpu.dot_dimension_numbers<[1], [0], [0], [1], [0, 0, 1, 1], [], []>} : vector<128x128xf32>, vector<128x128xf32>, vector<128x128xf32> -> vector<128x128xf32>
    %c0_3 = arith.constant 0 : index
    %c0_4 = arith.constant 0 : index
    %3 = vector.load %arg3[%c0_3, %c0_4] : memref<128x128xf32, #tpu.memory_space<vmem>>, vector<128x128xf32>
    tpu.vector_store %arg3[%c0_3, %c0_4], %2 {strides = array<i32>} : memref<128x128xf32, #tpu.memory_space<vmem>>, vector<128x128xf32>,
    return
  }
  func.func @transform_0(%arg0: i32) -> (i32, i32) {
    %c0_i32 = arith.constant 0 : i32
    %c0_i32_0 = arith.constant 0 : i32
    return %arg0, %c0_i32 : i32, i32
  }
  func.func @transform_1(%arg0: i32) -> (i32, i32) {
    %c0_i32 = arith.constant 0 : i32
    %c0_i32_0 = arith.constant 0 : i32
    %c0_i32_1 = arith.constant 0 : i32
    return %c0_i32, %c0_i32_0 : i32, i32
  }
  func.func @transform_2(%arg0: i32) -> (i32, i32) {
    %c0_i32 = arith.constant 0 : i32
    %c0_i32_0 = arith.constant 0 : i32
    return %arg0, %c0_i32 : i32, i32
  }
}

module attributes {stable_mosaic.version = 11 : i64} {
  func.func @_prop_oneshot_kernel(%arg0: i32, %arg1: memref<128x256xbf16, #tpu.memory_space<vmem>>, %arg2: memref<256x128xf32, #tpu.memory_space<vmem>>, %arg3: memref<1x128xf32, #tpu.memory_space<vmem>>, %arg4: memref<128x128xf32, #tpu.memory_space<vmem>>) attributes {dimension_semantics = [#tpu.dimension_semantics<parallel>], iteration_bounds = array<i64: 2>, scalar_prefetch = 0 : i64, scratch_operands = 0 : i64, tpu.core_type = #tpu.core_type<tc>, window_params = [{transform_indices = @transform_0, window_bounds = array<i64: 128, 256>}, {pipeline_mode = #tpu.pipeline_mode<synchronous>, transform_indices = @transform_1, window_bounds = array<i64: 256, 128>}, {pipeline_mode = #tpu.pipeline_mode<synchronous>, transform_indices = @transform_2, window_bounds = array<i64: 1, 128>}, {transform_indices = @transform_3, window_bounds = array<i64: 128, 128>}]} {
    %c0 = arith.constant 0 : index
    %c0_0 = arith.constant 0 : index
    %0 = vector.load %arg1[%c0, %c0_0] : memref<128x256xbf16, #tpu.memory_space<vmem>>, vector<128x256xbf16>
    %c0_1 = arith.constant 0 : index
    %c0_2 = arith.constant 0 : index
    %1 = vector.load %arg2[%c0_1, %c0_2] : memref<256x128xf32, #tpu.memory_space<vmem>>, vector<256x128xf32>
    %cst = arith.constant dense<0.000000e+00> : vector<128x128xf32>
    %2 = tpu.matmul %0, %1, %cst {dimension_numbers = #tpu.dot_dimension_numbers<[1], [0], [0], [1], [0, 0, 1, 1], [], []>} : vector<128x256xbf16>, vector<256x128xf32>, vector<128x128xf32> -> vector<128x128xf32>
    %c0_3 = arith.constant 0 : index
    %c0_4 = arith.constant 0 : index
    %3 = vector.load %arg3[%c0_3, %c0_4] : memref<1x128xf32, #tpu.memory_space<vmem>>, vector<1x128xf32>
    %4 = vector.broadcast %3 : vector<1x128xf32> to vector<128x128xf32>
    %5 = arith.addf %2, %4 : vector<128x128xf32>
    %cst_5 = arith.constant 0.000000e+00 : f32
    %6 = vector.broadcast %cst_5 : f32 to vector<128x128xf32>
    %7 = arith.maximumf %5, %6 : vector<128x128xf32>
    %c0_6 = arith.constant 0 : index
    %c0_7 = arith.constant 0 : index
    %8 = vector.load %arg4[%c0_6, %c0_7] : memref<128x128xf32, #tpu.memory_space<vmem>>, vector<128x128xf32>
    tpu.vector_store %arg4[%c0_6, %c0_7], %7 {strides = array<i32>} : memref<128x128xf32, #tpu.memory_space<vmem>>, vector<128x128xf32>,
    return
  }
  func.func @transform_0(%arg0: i32) -> (i32, i32) {
    %c0_i32 = arith.constant 0 : i32
    %c0_i32_0 = arith.constant 0 : i32
    return %arg0, %c0_i32 : i32, i32
  }
  func.func @transform_1(%arg0: i32) -> (i32, i32) {
    %c0_i32 = arith.constant 0 : i32
    %c0_i32_0 = arith.constant 0 : i32
    %c0_i32_1 = arith.constant 0 : i32
    return %c0_i32, %c0_i32_0 : i32, i32
  }
  func.func @transform_2(%arg0: i32) -> (i32, i32) {
    %c0_i32 = arith.constant 0 : i32
    %c0_i32_0 = arith.constant 0 : i32
    %c0_i32_1 = arith.constant 0 : i32
    return %c0_i32, %c0_i32_0 : i32, i32
  }
  func.func @transform_3(%arg0: i32) -> (i32, i32) {
    %c0_i32 = arith.constant 0 : i32
    %c0_i32_0 = arith.constant 0 : i32
    return %arg0, %c0_i32 : i32, i32
  }
}

module attributes {stable_mosaic.version = 11 : i64} {
  func.func @_mm_oneshot_kernel(%arg0: i32, %arg1: memref<128x128xf32, #tpu.memory_space<vmem>>, %arg2: memref<128x128xf32, #tpu.memory_space<vmem>>, %arg3: memref<128x128xf32, #tpu.memory_space<vmem>>) attributes {dimension_semantics = [#tpu.dimension_semantics<parallel>], iteration_bounds = array<i64: 2>, scalar_prefetch = 0 : i64, scratch_operands = 0 : i64, tpu.core_type = #tpu.core_type<tc>, window_params = [{transform_indices = @transform_0, window_bounds = array<i64: 128, 128>}, {pipeline_mode = #tpu.pipeline_mode<synchronous>, transform_indices = @transform_1, window_bounds = array<i64: 128, 128>}, {transform_indices = @transform_2, window_bounds = array<i64: 128, 128>}]} {
    %c0 = arith.constant 0 : index
    %c0_0 = arith.constant 0 : index
    %0 = vector.load %arg1[%c0, %c0_0] : memref<128x128xf32, #tpu.memory_space<vmem>>, vector<128x128xf32>
    %c0_1 = arith.constant 0 : index
    %c0_2 = arith.constant 0 : index
    %1 = vector.load %arg2[%c0_1, %c0_2] : memref<128x128xf32, #tpu.memory_space<vmem>>, vector<128x128xf32>
    %cst = arith.constant dense<0.000000e+00> : vector<128x128xf32>
    %2 = tpu.matmul %0, %1, %cst {dimension_numbers = #tpu.dot_dimension_numbers<[1], [0], [0], [1], [0, 0, 1, 1], [], []>} : vector<128x128xf32>, vector<128x128xf32>, vector<128x128xf32> -> vector<128x128xf32>
    %c0_3 = arith.constant 0 : index
    %c0_4 = arith.constant 0 : index
    %3 = vector.load %arg3[%c0_3, %c0_4] : memref<128x128xf32, #tpu.memory_space<vmem>>, vector<128x128xf32>
    tpu.vector_store %arg3[%c0_3, %c0_4], %2 {strides = array<i32>} : memref<128x128xf32, #tpu.memory_space<vmem>>, vector<128x128xf32>,
    return
  }
  func.func @transform_0(%arg0: i32) -> (i32, i32) {
    %c0_i32 = arith.constant 0 : i32
    %c0_i32_0 = arith.constant 0 : i32
    return %arg0, %c0_i32 : i32, i32
  }
  func.func @transform_1(%arg0: i32) -> (i32, i32) {
    %c0_i32 = arith.constant 0 : i32
    %c0_i32_0 = arith.constant 0 : i32
    %c0_i32_1 = arith.constant 0 : i32
    return %c0_i32, %c0_i32_0 : i32, i32
  }
  func.func @transform_2(%arg0: i32) -> (i32, i32) {
    %c0_i32 = arith.constant 0 : i32
    %c0_i32_0 = arith.constant 0 : i32
    return %arg0, %c0_i32 : i32, i32
  }
}

module attributes {stable_mosaic.version = 11 : i64} {
  func.func @_prop_oneshot_kernel(%arg0: i32, %arg1: memref<128x256xbf16, #tpu.memory_space<vmem>>, %arg2: memref<256x128xf32, #tpu.memory_space<vmem>>, %arg3: memref<1x128xf32, #tpu.memory_space<vmem>>, %arg4: memref<128x128xf32, #tpu.memory_space<vmem>>) attributes {dimension_semantics = [#tpu.dimension_semantics<parallel>], iteration_bounds = array<i64: 2>, scalar_prefetch = 0 : i64, scratch_operands = 0 : i64, tpu.core_type = #tpu.core_type<tc>, window_params = [{transform_indices = @transform_0, window_bounds = array<i64: 128, 256>}, {pipeline_mode = #tpu.pipeline_mode<synchronous>, transform_indices = @transform_1, window_bounds = array<i64: 256, 128>}, {pipeline_mode = #tpu.pipeline_mode<synchronous>, transform_indices = @transform_2, window_bounds = array<i64: 1, 128>}, {transform_indices = @transform_3, window_bounds = array<i64: 128, 128>}]} {
    %c0 = arith.constant 0 : index
    %c0_0 = arith.constant 0 : index
    %0 = vector.load %arg1[%c0, %c0_0] : memref<128x256xbf16, #tpu.memory_space<vmem>>, vector<128x256xbf16>
    %c0_1 = arith.constant 0 : index
    %c0_2 = arith.constant 0 : index
    %1 = vector.load %arg2[%c0_1, %c0_2] : memref<256x128xf32, #tpu.memory_space<vmem>>, vector<256x128xf32>
    %cst = arith.constant dense<0.000000e+00> : vector<128x128xf32>
    %2 = tpu.matmul %0, %1, %cst {dimension_numbers = #tpu.dot_dimension_numbers<[1], [0], [0], [1], [0, 0, 1, 1], [], []>} : vector<128x256xbf16>, vector<256x128xf32>, vector<128x128xf32> -> vector<128x128xf32>
    %c0_3 = arith.constant 0 : index
    %c0_4 = arith.constant 0 : index
    %3 = vector.load %arg3[%c0_3, %c0_4] : memref<1x128xf32, #tpu.memory_space<vmem>>, vector<1x128xf32>
    %4 = vector.broadcast %3 : vector<1x128xf32> to vector<128x128xf32>
    %5 = arith.addf %2, %4 : vector<128x128xf32>
    %6 = tpu.iota {dimensions = array<i32: 1>} : vector<128x128xi32>
    %c8_i32 = arith.constant 8 : i32
    %7 = vector.broadcast %c8_i32 : i32 to vector<128x128xi32>
    %8 = arith.cmpi slt, %6, %7 : vector<128x128xi32>
    %cst_5 = arith.constant 0xFF800000 : f32
    %9 = vector.broadcast %cst_5 : f32 to vector<128x128xf32>
    %10 = arith.select %8, %5, %9 : vector<128x128xi1>, vector<128x128xf32>
    %cst_6 = arith.constant dense<0xFF800000> : vector<128xf32>
    %11 = vector.multi_reduction <maximumf>, %10, %cst_6 [1] : vector<128x128xf32> to vector<128xf32>
    %12 = vector.shape_cast %11 : vector<128xf32> to vector<128x1xf32>
    %13 = vector.broadcast %12 : vector<128x1xf32> to vector<128x128xf32>
    %14 = arith.subf %10, %13 : vector<128x128xf32>
    %15 = math.exp %14 : vector<128x128xf32>
    %cst_7 = arith.constant dense<0.000000e+00> : vector<128xf32>
    %16 = vector.multi_reduction <add>, %15, %cst_7 [1] : vector<128x128xf32> to vector<128xf32>
    %17 = vector.shape_cast %16 : vector<128xf32> to vector<128x1xf32>
    %18 = math.log %17 : vector<128x1xf32>
    %c8_i32_8 = arith.constant 8 : i32
    %19 = vector.broadcast %c8_i32_8 : i32 to vector<128x128xi32>
    %20 = arith.cmpi slt, %6, %19 : vector<128x128xi32>
    %21 = vector.broadcast %18 : vector<128x1xf32> to vector<128x128xf32>
    %22 = arith.subf %14, %21 : vector<128x128xf32>
    %cst_9 = arith.constant 0.000000e+00 : f32
    %23 = vector.broadcast %cst_9 : f32 to vector<128x128xf32>
    %24 = arith.select %20, %22, %23 : vector<128x128xi1>, vector<128x128xf32>
    %c0_10 = arith.constant 0 : index
    %c0_11 = arith.constant 0 : index
    %25 = vector.load %arg4[%c0_10, %c0_11] : memref<128x128xf32, #tpu.memory_space<vmem>>, vector<128x128xf32>
    tpu.vector_store %arg4[%c0_10, %c0_11], %24 {strides = array<i32>} : memref<128x128xf32, #tpu.memory_space<vmem>>, vector<128x128xf32>,
    return
  }
  func.func @transform_0(%arg0: i32) -> (i32, i32) {
    %c0_i32 = arith.constant 0 : i32
    %c0_i32_0 = arith.constant 0 : i32
    return %arg0, %c0_i32 : i32, i32
  }
  func.func @transform_1(%arg0: i32) -> (i32, i32) {
    %c0_i32 = arith.constant 0 : i32
    %c0_i32_0 = arith.constant 0 : i32
    %c0_i32_1 = arith.constant 0 : i32
    return %c0_i32, %c0_i32_0 : i32, i32
  }
  func.func @transform_2(%arg0: i32) -> (i32, i32) {
    %c0_i32 = arith.constant 0 : i32
    %c0_i32_0 = arith.constant 0 : i32
    %c0_i32_1 = arith.constant 0 : i32
    return %c0_i32, %c0_i32_0 : i32, i32
  }
  func.func @transform_3(%arg0: i32) -> (i32, i32) {
    %c0_i32 = arith.constant 0 : i32
    %c0_i32_0 = arith.constant 0 : i32
    return %arg0, %c0_i32 : i32, i32
  }
}

</mosaic_0001>

<llo_original>
// kernel: gcn_forward_prepared.6
$region0: #{gcn_forward_prepared.6}
  #allocation0 [shape = 'u32[]', space=smem, size = 0x4, offset = 0x4, fixed_abs, tag = 'smem constant byte address 0x4 - core index']
  #allocation1 [shape = 'u32[144,128]{1,0:T(1,128)}', space=vmem, size = 0x12000, scoped, tag = 'internal scratch']
  %s0 = inlined_call_operand.vmem [shape: f32[256,128], index: 0, kind: input, shape index: {}]
  %s1 = inlined_call_operand.vmem [shape: f32[128,128], index: 1, kind: input, shape index: {}]
  %s2 = inlined_call_operand.vmem [shape: f32[256,128], index: 2, kind: output, shape index: {}]
  %s3 = sld [smem:[#allocation0]]
  $region41: #{gcn_forward_prepared.6} parent=0
    _
  %s5 = ssub.s32 1, %s3
  %s6 = scalar_select 0, %s5, %s3
  loop: start=0, step=1, limit=4
  $region2: #{gcn_forward_prepared.6} parent=0 // loop_pre_header
    _
  $region3: #{gcn_forward_prepared.6} parent=0 // loop_header
    %s8 = sphi 0, %s12
    %p9 = scmp.ge.s32.totalorder %s8, 4
    %s18 = sphi 0, %s20
    %s21 = sphi 0, %s18
    %s22 = sphi 0, %s21
    %s38 = sphi 0, %s22
    %s42 = sphi 0, %s42
    %s44 = sphi 0, %s42
    %s45 = sphi 0, %s44
    %s59 = sphi 0, %s45
    %s65 = sphi 0, %s67
    %s68 = sphi 0, %s65
    %s69 = sphi 0, %s68
    %s85 = sphi 0, %s69
  $region4: #{gcn_forward_prepared.6} parent=0 // loop_header_branch
    %11 = sbr.rel (%p9) target = $region8
  $region5: #{gcn_forward_prepared.6} parent=0 // loop_body
    %s13 = ssub.s32 %s8, 1
    %s14 = ssub.s32 %s8, 2
    %s15 = sadd.s32 %s8, 1
    %s16 = ssub.s32 %s8, %s15
    %p17 = scmp.eq.s32.totalorder %s16, 0
    %s19 = sadd.s32 %s18, 1
    %s20 = scalar_select %p17, %s18, %s19
    %p23 = pneg %p17
    %p24 = scmp.eq.s32.totalorder %s8, 1
    %p25 = por %p23, %p24
    %p26 = scmp.ne.s32.totalorder %s18, %s21
    %p27 = scmp.eq.s32.totalorder %s8, 0
    %p28 = por %p26, %p27
    %p29 = scmp.ne.s32.totalorder %s18, %s21
    %p30 = scmp.eq.s32.totalorder %s13, 1
    %p31 = por %p29, %p30
    %p32 = scmp.ne.s32.totalorder %s21, %s22
    %p33 = scmp.eq.s32.totalorder %s13, 0
    %p34 = por %p32, %p33
    %p35 = scmp.ne.s32.totalorder %s21, %s22
    %p36 = scmp.eq.s32.totalorder %s14, 1
    %p37 = por %p35, %p36
    %p39 = scmp.ne.s32.totalorder %s22, %s38
    %p40 = scmp.eq.s32.totalorder %s14, 0
    %p41 = por %p39, %p40
    %s43 = sadd.s32 %s42, 1
    %p46 = scmp.eq.s32.totalorder %s8, 1
    %p47 = scmp.ne.s32.totalorder %s42, %s44
    %p48 = scmp.eq.s32.totalorder %s8, 0
    %p49 = por %p47, %p48
    %p50 = scmp.ne.s32.totalorder %s42, %s44
    %p51 = scmp.eq.s32.totalorder %s13, 1
    %p52 = por %p50, %p51
    %p53 = scmp.ne.s32.totalorder %s44, %s45
    %p54 = scmp.eq.s32.totalorder %s13, 0
    %p55 = por %p53, %p54
    %p56 = scmp.ne.s32.totalorder %s44, %s45
    %p57 = scmp.eq.s32.totalorder %s14, 1
    %p58 = por %p56, %p57
    %p60 = scmp.ne.s32.totalorder %s45, %s59
    %p61 = scmp.eq.s32.totalorder %s14, 0
    %p62 = por %p60, %p61
    %s63 = ssub.s32 %s8, %s15
    %p64 = scmp.eq.s32.totalorder %s63, 0
    %s66 = sadd.s32 %s65, 1
    %s67 = scalar_select %p64, %s65, %s66
    %p70 = pneg %p64
    %p71 = scmp.eq.s32.totalorder %s8, 1
    %p72 = por %p70, %p71
    %p73 = scmp.ne.s32.totalorder %s65, %s68
    %p74 = scmp.eq.s32.totalorder %s8, 0
    %p75 = por %p73, %p74
    %p76 = scmp.ne.s32.totalorder %s65, %s68
    %p77 = scmp.eq.s32.totalorder %s13, 1
    %p78 = por %p76, %p77
    %p79 = scmp.ne.s32.totalorder %s68, %s69
    %p80 = scmp.eq.s32.totalorder %s13, 0
    %p81 = por %p79, %p80
    %p82 = scmp.ne.s32.totalorder %s68, %s69
    %p83 = scmp.eq.s32.totalorder %s14, 1
    %p84 = por %p82, %p83
    %p86 = scmp.ne.s32.totalorder %s69, %s85
    %p87 = scmp.eq.s32.totalorder %s14, 0
    %p88 = por %p86, %p87
    %p89 = scmp.le.s32.totalorder 1, %s8
    %p90 = scmp.lt.s32.totalorder %s8, 3
    %p91 = pnand %p89, %p90
    %p92 = pneg %p91
    // Predicated region
    $region9: #{gcn_forward_prepared.6} parent=5 // pred_check
      _
    $region10: #{gcn_forward_prepared.6} parent=5 // pred_check_branch
      %94 = sbr.rel (%p91) target = $region12
    $region11: #{gcn_forward_prepared.6} parent=5 // pred_region
      %s95 = ssub.s32 %s8, 1
      // Predicated region
      $region13: #{gcn_forward_prepared.6} parent=11 // pred_check
        %p96 = pneg %p55
      $region14: #{gcn_forward_prepared.6} parent=11 // pred_check_branch
        %98 = sbr.rel (%p96) target = $region16
      $region15: #{gcn_forward_prepared.6} parent=11 // pred_region
        _
      $region16: #{gcn_forward_prepared.6} parent=11 // pred_fallthru
        _
    $region12: #{gcn_forward_prepared.6} parent=5 // pred_fallthru
      _
    %p99 = scmp.lt.s32.totalorder %s8, 2
    // Predicated region
    $region17: #{gcn_forward_prepared.6} parent=5 // pred_check
      %p100 = pneg %p99
    $region18: #{gcn_forward_prepared.6} parent=5 // pred_check_branch
      %102 = sbr.rel (%p100) target = $region20
    $region19: #{gcn_forward_prepared.6} parent=5 // pred_region
      // Predicated region
      $region21: #{gcn_forward_prepared.6} parent=19 // pred_check
        %p103 = pneg %p28
      $region22: #{gcn_forward_prepared.6} parent=19 // pred_check_branch
        %105 = sbr.rel (%p103) target = $region24
      $region23: #{gcn_forward_prepared.6} parent=19 // pred_region
        %s106 = smul.u32 16, %s8
        %p107 = scmp.lt.s32.totalorder %s106, 31
        %s108 = scalar_select %p107, %s106, 31
        %s109 = smul.addr %s108, 8
        %s110 = scalar_lea.vmem %s0, %s109
        %s111 = smul.u32 16, %s8
      $region24: #{gcn_forward_prepared.6} parent=19 // pred_fallthru
        _
    $region20: #{gcn_forward_prepared.6} parent=5 // pred_fallthru
      _
    %p112 = scmp.le.s32.totalorder 1, %s8
    %p113 = scmp.lt.s32.totalorder %s8, 3
    %p114 = pnand %p112, %p113
    %p115 = pneg %p114
    // Predicated region
    $region25: #{gcn_forward_prepared.6} parent=5 // pred_check
      _
    $region26: #{gcn_forward_prepared.6} parent=5 // pred_check_branch
      %117 = sbr.rel (%p114) target = $region28
    $region27: #{gcn_forward_prepared.6} parent=5 // pred_region
      %s118 = ssub.s32 %s8, 1
      %s119 = smul.u32 16, %s13
      %p120 = scmp.lt.s32.totalorder %s119, 31
      %s121 = scalar_select %p120, %s119, 31
      %s122 = smul.addr %s121, 8
      %s123 = scalar_lea.vmem %s0, %s122
      %p124 = pneg %p34
      %p125 = pneg %p31
      %p126 = pneg %p55
      %p127 = pneg %p52
      %p128 = pneg %p81
      %p129 = pneg %p78
      %s130 = smul.u32 16, %s13
      %p131 = scmp.lt.s32.totalorder %s130, 31
      %s132 = scalar_select %p131, %s130, 31
      %s133 = smul.addr %s132, 8
      %s134 = scalar_lea.vmem %s2, %s133
      %s135 = smul.u32 16, %s13
      %p136 = scmp.lt.s32.totalorder %s135, 31
      %s137 = scalar_select %p136, %s135, 31
      %s138 = smul.addr %s137, 8
      %s139 = scalar_lea.vmem %s0, %s138
      %s140 = smul.u32 16, %s13
      %s141 = smul.u32 16, %s13
      %p142 = scmp.lt.s32.totalorder %s141, 31
      %s143 = scalar_select %p142, %s141, 31
      %s144 = smul.addr %s143, 8
      %s145 = scalar_lea.vmem %s2, %s144
      %s146 = smul.u32 16, %s13
      %v147 = vld [vmem:[%s139] sm:$0xff]
      %v148 = vld [vmem:[%s139 + $0x8] sm:$0xff]
      %v149 = vld [vmem:[%s139 + $0x10] sm:$0xff]
      %v150 = vld [vmem:[%s139 + $0x18] sm:$0xff]
      %v151 = vld [vmem:[%s139 + $0x20] sm:$0xff]
      %v152 = vld [vmem:[%s139 + $0x28] sm:$0xff]
      %v153 = vld [vmem:[%s139 + $0x30] sm:$0xff]
      %v154 = vld [vmem:[%s139 + $0x38] sm:$0xff]
      %v155 = vld [vmem:[%s139 + $0x40] sm:$0xff]
      %v156 = vld [vmem:[%s139 + $0x48] sm:$0xff]
      %v157 = vld [vmem:[%s139 + $0x50] sm:$0xff]
      %v158 = vld [vmem:[%s139 + $0x58] sm:$0xff]
      %v159 = vld [vmem:[%s139 + $0x60] sm:$0xff]
      %v160 = vld [vmem:[%s139 + $0x68] sm:$0xff]
      %v161 = vld [vmem:[%s139 + $0x70] sm:$0xff]
      %v162 = vld [vmem:[%s139 + $0x78] sm:$0xff]
      %v163 = vld [vmem:[%s1] sm:$0xff]
      %v164 = vld [vmem:[%s1 + $0x8] sm:$0xff]
      %v165 = vld [vmem:[%s1 + $0x10] sm:$0xff]
      %v166 = vld [vmem:[%s1 + $0x18] sm:$0xff]
      %v167 = vld [vmem:[%s1 + $0x20] sm:$0xff]
      %v168 = vld [vmem:[%s1 + $0x28] sm:$0xff]
      %v169 = vld [vmem:[%s1 + $0x30] sm:$0xff]
      %v170 = vld [vmem:[%s1 + $0x38] sm:$0xff]
      %v171 = vld [vmem:[%s1 + $0x40] sm:$0xff]
      %v172 = vld [vmem:[%s1 + $0x48] sm:$0xff]
      %v173 = vld [vmem:[%s1 + $0x50] sm:$0xff]
      %v174 = vld [vmem:[%s1 + $0x58] sm:$0xff]
      %v175 = vld [vmem:[%s1 + $0x60] sm:$0xff]
      %v176 = vld [vmem:[%s1 + $0x68] sm:$0xff]
      %v177 = vld [vmem:[%s1 + $0x70] sm:$0xff]
      %v178 = vld [vmem:[%s1 + $0x78] sm:$0xff]
      %179 = vmatprep.subr.mxu0 0.0
      %180 = vmatpush1.msra.mxu0 %v163
      %181 = vmatprep.subr.mxu0 0.0
      %182 = vmatpush1.msra.mxu0 %v164
      %183 = vmatprep.subr.mxu0 0.0
      %184 = vmatpush1.msra.mxu0 %v165
      %185 = vmatprep.subr.mxu0 0.0
      %186 = vmatpush1.msra.mxu0 %v166
      %187 = vmatprep.subr.mxu0 0.0
      %188 = vmatpush1.msra.mxu0 %v167
      %189 = vmatprep.subr.mxu0 0.0
      %190 = vmatpush1.msra.mxu0 %v168
      %191 = vmatprep.subr.mxu0 0.0
      %192 = vmatpush1.msra.mxu0 %v169
      %193 = vmatprep.subr.mxu0 0.0
      %194 = vmatpush1.msra.mxu0 %v170
      %195 = vmatprep.subr.mxu0 0.0
      %196 = vmatpush1.msra.mxu0 %v171
      %197 = vmatprep.subr.mxu0 0.0
      %198 = vmatpush1.msra.mxu0 %v172
      %199 = vmatprep.subr.mxu0 0.0
      %200 = vmatpush1.msra.mxu0 %v173
      %201 = vmatprep.subr.mxu0 0.0
      %202 = vmatpush1.msra.mxu0 %v174
      %203 = vmatprep.subr.mxu0 0.0
      %204 = vmatpush1.msra.mxu0 %v175
      %205 = vmatprep.subr.mxu0 0.0
      %206 = vmatpush1.msra.mxu0 %v176
      %207 = vmatprep.subr.mxu0 0.0
      %208 = vmatpush1.msra.mxu0 %v177
      %209 = vmatprep.subr.mxu0 0.0
      %210 = vmatpush1.msra.mxu0 %v178
      %211 = vmatprep.subr.mxu0 0.0
      %212 = vmatpush1.msra.mxu0 0.0
      %213 = vmatprep.subr.mxu0 0.0
      %214 = vmatpush1.msra.mxu0 0.0
      %215 = vmatprep.subr.mxu0 0.0
      %216 = vmatpush1.msra.mxu0 0.0
      %217 = vmatprep.subr.mxu0 0.0
      %218 = vmatpush1.msra.mxu0 0.0
      %219 = vmatprep.subr.mxu0 0.0
      %220 = vmatpush1.msra.mxu0 0.0
      %221 = vmatprep.subr.mxu0 0.0
      %222 = vmatpush1.msra.mxu0 0.0
      %223 = vmatprep.subr.mxu0 0.0
      %224 = vmatpush1.msra.mxu0 0.0
      %225 = vmatprep.subr.mxu0 0.0
      %226 = vmatpush1.msra.mxu0 0.0
      %227 = vmatprep.subr.mxu0 0.0
      %228 = vmatpush1.msra.mxu0 0.0
      %229 = vmatprep.subr.mxu0 0.0
      %230 = vmatpush1.msra.mxu0 0.0
      %231 = vmatprep.subr.mxu0 0.0
      %232 = vmatpush1.msra.mxu0 0.0
      %233 = vmatprep.subr.mxu0 0.0
      %234 = vmatpush1.msra.mxu0 0.0
      %235 = vmatprep.subr.mxu0 0.0
      %236 = vmatpush1.msra.mxu0 0.0
      %237 = vmatprep.subr.mxu0 0.0
      %238 = vmatpush1.msra.mxu0 0.0
      %239 = vmatprep.subr.mxu0 0.0
      %240 = vmatpush1.msra.mxu0 0.0
      %241 = vmatprep.subr.mxu0 0.0
      %242 = vmatpush1.msra.mxu0 0.0
      %243 = vmatprep.mubr.f32.mxu0 0.0
      %244 = vmatmul.mubr.f32.gmra.mrb[0].mxu0 %v147
      %v245 = vpop.f32.mrb[0].mxu0
      %v246 = vadd.f32 0.0, %v245
      %v247 = vpop.f32.mrb[0].mxu0
      %248 = vmatprep.mubr.f32.mxu0 0.0
      %249 = vmatmul.mubr.f32.gmra.mrb[0].mxu0 %v148
      %v250 = vpop.f32.mrb[0].mxu0
      %v251 = vadd.f32 0.0, %v250
      %v252 = vpop.f32.mrb[0].mxu0
      %253 = vmatprep.mubr.f32.mxu0 0.0
      %254 = vmatmul.mubr.f32.gmra.mrb[0].mxu0 %v149
      %v255 = vpop.f32.mrb[0].mxu0
      %v256 = vadd.f32 0.0, %v255
      %v257 = vpop.f32.mrb[0].mxu0
      %258 = vmatprep.mubr.f32.mxu0 0.0
      %259 = vmatmul.mubr.f32.gmra.mrb[0].mxu0 %v150
      %v260 = vpop.f32.mrb[0].mxu0
      %v261 = vadd.f32 0.0, %v260
      %v262 = vpop.f32.mrb[0].mxu0
      %263 = vmatprep.mubr.f32.mxu0 0.0
      %264 = vmatmul.mubr.f32.gmra.mrb[0].mxu0 %v151
      %v265 = vpop.f32.mrb[0].mxu0
      %v266 = vadd.f32 0.0, %v265
      %v267 = vpop.f32.mrb[0].mxu0
      %268 = vmatprep.mubr.f32.mxu0 0.0
      %269 = vmatmul.mubr.f32.gmra.mrb[0].mxu0 %v152
      %v270 = vpop.f32.mrb[0].mxu0
      %v271 = vadd.f32 0.0, %v270
      %v272 = vpop.f32.mrb[0].mxu0
      %273 = vmatprep.mubr.f32.mxu0 0.0
      %274 = vmatmul.mubr.f32.gmra.mrb[0].mxu0 %v153
      %v275 = vpop.f32.mrb[0].mxu0
      %v276 = vadd.f32 0.0, %v275
      %v277 = vpop.f32.mrb[0].mxu0
      %278 = vmatprep.mubr.f32.mxu0 0.0
      %279 = vmatmul.mubr.f32.gmra.mrb[0].mxu0 %v154
      %v280 = vpop.f32.mrb[0].mxu0
      %v281 = vadd.f32 0.0, %v280
      %v282 = vpop.f32.mrb[0].mxu0
      %283 = vmatprep.mubr.f32.mxu0 0.0
      %284 = vmatmul.mubr.f32.gmra.mrb[0].mxu0 %v155
      %v285 = vpop.f32.mrb[0].mxu0
      %v286 = vadd.f32 0.0, %v285
      %v287 = vpop.f32.mrb[0].mxu0
      %288 = vmatprep.mubr.f32.mxu0 0.0
      %289 = vmatmul.mubr.f32.gmra.mrb[0].mxu0 %v156
      %v290 = vpop.f32.mrb[0].mxu0
      %v291 = vadd.f32 0.0, %v290
      %v292 = vpop.f32.mrb[0].mxu0
      %293 = vmatprep.mubr.f32.mxu0 0.0
      %294 = vmatmul.mubr.f32.gmra.mrb[0].mxu0 %v157
      %v295 = vpop.f32.mrb[0].mxu0
      %v296 = vadd.f32 0.0, %v295
      %v297 = vpop.f32.mrb[0].mxu0
      %298 = vmatprep.mubr.f32.mxu0 0.0
      %299 = vmatmul.mubr.f32.gmra.mrb[0].mxu0 %v158
      %v300 = vpop.f32.mrb[0].mxu0
      %v301 = vadd.f32 0.0, %v300
      %v302 = vpop.f32.mrb[0].mxu0
      %303 = vmatprep.mubr.f32.mxu0 0.0
      %304 = vmatmul.mubr.f32.gmra.mrb[0].mxu0 %v159
      %v305 = vpop.f32.mrb[0].mxu0
      %v306 = vadd.f32 0.0, %v305
      %v307 = vpop.f32.mrb[0].mxu0
      %308 = vmatprep.mubr.f32.mxu0 0.0
      %309 = vmatmul.mubr.f32.gmra.mrb[0].mxu0 %v160
      %v310 = vpop.f32.mrb[0].mxu0
      %v311 = vadd.f32 0.0, %v310
      %v312 = vpop.f32.mrb[0].mxu0
      %313 = vmatprep.mubr.f32.mxu0 0.0
      %314 = vmatmul.mubr.f32.gmra.mrb[0].mxu0 %v161
      %v315 = vpop.f32.mrb[0].mxu0
      %v316 = vadd.f32 0.0, %v315
      %v317 = vpop.f32.mrb[0].mxu0
      %318 = vmatprep.mubr.f32.mxu0 0.0
      %319 = vmatmul.mubr.f32.gmra.mrb[0].mxu0 %v162
      %v320 = vpop.f32.mrb[0].mxu0
      %v321 = vadd.f32 0.0, %v320
      %v322 = vpop.f32.mrb[0].mxu0
      %323 = vdwg.mxu0
      %324 = vst [vmem:[%s145] sm:$0xff] %v246
      %325 = vst [vmem:[%s145 + $0x8] sm:$0xff] %v251
      %326 = vst [vmem:[%s145 + $0x10] sm:$0xff] %v256
      %327 = vst [vmem:[%s145 + $0x18] sm:$0xff] %v261
      %328 = vst [vmem:[%s145 + $0x20] sm:$0xff] %v266
      %329 = vst [vmem:[%s145 + $0x28] sm:$0xff] %v271
      %330 = vst [vmem:[%s145 + $0x30] sm:$0xff] %v276
      %331 = vst [vmem:[%s145 + $0x38] sm:$0xff] %v281
      %332 = vst [vmem:[%s145 + $0x40] sm:$0xff] %v286
      %333 = vst [vmem:[%s145 + $0x48] sm:$0xff] %v291
      %334 = vst [vmem:[%s145 + $0x50] sm:$0xff] %v296
      %335 = vst [vmem:[%s145 + $0x58] sm:$0xff] %v301
      %336 = vst [vmem:[%s145 + $0x60] sm:$0xff] %v306
      %337 = vst [vmem:[%s145 + $0x68] sm:$0xff] %v311
      %338 = vst [vmem:[%s145 + $0x70] sm:$0xff] %v316
      %339 = vst [vmem:[%s145 + $0x78] sm:$0xff] %v321
      %s340 = smul.u32 16, %s13
      %p341 = scmp.lt.s32.totalorder %s340, 31
      %s342 = scalar_select %p341, %s340, 31
      %s343 = smul.addr %s342, 8
      %s344 = scalar_lea.vmem %s2, %s343
      // Predicated region
      $region29: #{gcn_forward_prepared.6} parent=27 // pred_check
        %p345 = pneg %p78
      $region30: #{gcn_forward_prepared.6} parent=27 // pred_check_branch
        %347 = sbr.rel (%p345) target = $region32
      $region31: #{gcn_forward_prepared.6} parent=27 // pred_region
        %s348 = smul.u32 16, %s13
      $region32: #{gcn_forward_prepared.6} parent=27 // pred_fallthru
        _
    $region28: #{gcn_forward_prepared.6} parent=5 // pred_fallthru
      _
    %p349 = scmp.le.s32.totalorder 2, %s8
    // Predicated region
    $region33: #{gcn_forward_prepared.6} parent=5 // pred_check
      %p350 = pneg %p349
    $region34: #{gcn_forward_prepared.6} parent=5 // pred_check_branch
      %352 = sbr.rel (%p350) target = $region36
    $region35: #{gcn_forward_prepared.6} parent=5 // pred_region
      %s353 = ssub.s32 %s8, 2
      // Predicated region
      $region37: #{gcn_forward_prepared.6} parent=35 // pred_check
        %p354 = pneg %p84
      $region38: #{gcn_forward_prepared.6} parent=35 // pred_check_branch
        %356 = sbr.rel (%p354) target = $region40
      $region39: #{gcn_forward_prepared.6} parent=35 // pred_region
        %s357 = smul.u32 16, %s14
        %p358 = scmp.lt.s32.totalorder %s357, 31
        %s359 = scalar_select %p358, %s357, 31
        %s360 = smul.addr %s359, 8
        %s361 = scalar_lea.vmem %s2, %s360
      $region40: #{gcn_forward_prepared.6} parent=35 // pred_fallthru
        _
    $region36: #{gcn_forward_prepared.6} parent=5 // pred_fallthru
      _
  $region6: #{gcn_forward_prepared.6} parent=0 // loop_footer
    %s12 = sadd.s32 1, %s8
  $region7: #{gcn_forward_prepared.6} parent=0 // loop_footer_branch
    %7 = sbr.rel target = $region3
  $region8: #{gcn_forward_prepared.6} parent=0 // loop_exit
    _

// kernel: gcn_forward_prepared.4
$region0: #{gcn_forward_prepared.4}
  #allocation0 [shape = 'u32[]', space=smem, size = 0x4, offset = 0x4, fixed_abs, tag = 'smem constant byte address 0x4 - core index']
  #allocation1 [shape = 'u32[144,128]{1,0:T(1,128)}', space=vmem, size = 0x12000, scoped, tag = 'internal scratch']
  %s0 = inlined_call_operand.hbm [shape: f32[256,128], index: 0, kind: input, shape index: {}]
  %s1 = inlined_call_operand.hbm [shape: f32[128,128], index: 1, kind: input, shape index: {}]
  %s2 = inlined_call_operand.vmem [shape: f32[256,128], index: 2, kind: output, shape index: {}]
  %s3 = sld [smem:[#allocation0]]
  $region49: #{gcn_forward_prepared.4} parent=0
    _
  %s5 = ssub.s32 1, %s3
  %s6 = scalar_select 0, %s5, %s3
  $region1: #{gcn_forward_prepared.4} parent=0
    #allocation2 [shape = 'u8[131072]{0}', space=vmem, size = 0x20000, scoped, tag = 'input window, operand 0']
    #allocation3 [shape = 's32[2]{0}', space=sflag, size = 0x8, scoped, tag = 'scoped memory for gcn_forward_prepared.4']
    #allocation4 [shape = 'u8[65536]{0}', space=vmem, size = 0x10000, scoped, tag = 'input window, operand 1, single buffered']
    #allocation5 [shape = 's32[1]{0}', space=sflag, size = 0x4, scoped, tag = 'scoped memory for gcn_forward_prepared.4']
    %7 = vsyncpa [#allocation3], 0
    %s8 = scalar_lea.sflag [#allocation3], 1
    %9 = vsyncpa %s8, 0
    %10 = vsyncpa [#allocation5], 0
    loop: start=0, step=1, limit=4
    $region2: #{gcn_forward_prepared.4} parent=1 // loop_pre_header
      _
    $region3: #{gcn_forward_prepared.4} parent=1 // loop_header
      %s12 = sphi 0, %s16
      %p13 = scmp.ge.s32.totalorder %s12, 4
      %s22 = sphi 0, %s24
      %s25 = sphi 0, %s22
      %s26 = sphi 0, %s25
      %s42 = sphi 0, %s26
      %s46 = sphi 0, %s46
      %s48 = sphi 0, %s46
      %s49 = sphi 0, %s48
      %s63 = sphi 0, %s49
      %s69 = sphi 0, %s71
      %s72 = sphi 0, %s69
      %s73 = sphi 0, %s72
      %s89 = sphi 0, %s73
    $region4: #{gcn_forward_prepared.4} parent=1 // loop_header_branch
      %15 = sbr.rel (%p13) target = $region8
    $region5: #{gcn_forward_prepared.4} parent=1 // loop_body
      %s17 = ssub.s32 %s12, 1
      %s18 = ssub.s32 %s12, 2
      %s19 = sadd.s32 %s12, 1
      %s20 = ssub.s32 %s12, %s19
      %p21 = scmp.eq.s32.totalorder %s20, 0
      %s23 = sadd.s32 %s22, 1
      %s24 = scalar_select %p21, %s22, %s23
      %p27 = pneg %p21
      %p28 = scmp.eq.s32.totalorder %s12, 1
      %p29 = por %p27, %p28
      %p30 = scmp.ne.s32.totalorder %s22, %s25
      %p31 = scmp.eq.s32.totalorder %s12, 0
      %p32 = por %p30, %p31
      %p33 = scmp.ne.s32.totalorder %s22, %s25
      %p34 = scmp.eq.s32.totalorder %s17, 1
      %p35 = por %p33, %p34
      %p36 = scmp.ne.s32.totalorder %s25, %s26
      %p37 = scmp.eq.s32.totalorder %s17, 0
      %p38 = por %p36, %p37
      %p39 = scmp.ne.s32.totalorder %s25, %s26
      %p40 = scmp.eq.s32.totalorder %s18, 1
      %p41 = por %p39, %p40
      %p43 = scmp.ne.s32.totalorder %s26, %s42
      %p44 = scmp.eq.s32.totalorder %s18, 0
      %p45 = por %p43, %p44
      %s47 = sadd.s32 %s46, 1
      %p50 = scmp.eq.s32.totalorder %s12, 1
      %p51 = scmp.ne.s32.totalorder %s46, %s48
      %p52 = scmp.eq.s32.totalorder %s12, 0
      %p53 = por %p51, %p52
      %p54 = scmp.ne.s32.totalorder %s46, %s48
      %p55 = scmp.eq.s32.totalorder %s17, 1
      %p56 = por %p54, %p55
      %p57 = scmp.ne.s32.totalorder %s48, %s49
      %p58 = scmp.eq.s32.totalorder %s17, 0
      %p59 = por %p57, %p58
      %p60 = scmp.ne.s32.totalorder %s48, %s49
      %p61 = scmp.eq.s32.totalorder %s18, 1
      %p62 = por %p60, %p61
      %p64 = scmp.ne.s32.totalorder %s49, %s63
      %p65 = scmp.eq.s32.totalorder %s18, 0
      %p66 = por %p64, %p65
      %s67 = ssub.s32 %s12, %s19
      %p68 = scmp.eq.s32.totalorder %s67, 0
      %s70 = sadd.s32 %s69, 1
      %s71 = scalar_select %p68, %s69, %s70
      %p74 = pneg %p68
      %p75 = scmp.eq.s32.totalorder %s12, 1
      %p76 = por %p74, %p75
      %p77 = scmp.ne.s32.totalorder %s69, %s72
      %p78 = scmp.eq.s32.totalorder %s12, 0
      %p79 = por %p77, %p78
      %p80 = scmp.ne.s32.totalorder %s69, %s72
      %p81 = scmp.eq.s32.totalorder %s17, 1
      %p82 = por %p80, %p81
      %p83 = scmp.ne.s32.totalorder %s72, %s73
      %p84 = scmp.eq.s32.totalorder %s17, 0
      %p85 = por %p83, %p84
      %p86 = scmp.ne.s32.totalorder %s72, %s73
      %p87 = scmp.eq.s32.totalorder %s18, 1
      %p88 = por %p86, %p87
      %p90 = scmp.ne.s32.totalorder %s73, %s89
      %p91 = scmp.eq.s32.totalorder %s18, 0
      %p92 = por %p90, %p91
      %p93 = scmp.le.s32.totalorder 1, %s12
      %p94 = scmp.lt.s32.totalorder %s12, 3
      %p95 = pnand %p93, %p94
      %p96 = pneg %p95
      // Predicated region
      $region9: #{gcn_forward_prepared.4} parent=5 // pred_check
        _
      $region10: #{gcn_forward_prepared.4} parent=5 // pred_check_branch
        %98 = sbr.rel (%p95) target = $region12
      $region11: #{gcn_forward_prepared.4} parent=5 // pred_region
        %s99 = ssub.s32 %s12, 1
        // Predicated region
        $region13: #{gcn_forward_prepared.4} parent=11 // pred_check
          %p100 = pneg %p59
        $region14: #{gcn_forward_prepared.4} parent=11 // pred_check_branch
          %102 = sbr.rel (%p100) target = $region16
        $region15: #{gcn_forward_prepared.4} parent=11 // pred_region
          %s104 = ssub.s32 2048, 2048
          %105 = vsyncadd [#allocation5], %s104
          %s106 = sshll.u32 [#allocation4], 4
          %s107 = int_to_ptr.vmem [resolvable:$true] %s106
          %112 = dma.hbm_to_vmem [thread:$0]  %s1, 2048, %s107, [#allocation5], 128, 128, 8
        $region16: #{gcn_forward_prepared.4} parent=11 // pred_fallthru
          _
      $region12: #{gcn_forward_prepared.4} parent=5 // pred_fallthru
        _
      %p113 = scmp.lt.s32.totalorder %s12, 2
      // Predicated region
      $region17: #{gcn_forward_prepared.4} parent=5 // pred_check
        %p114 = pneg %p113
      $region18: #{gcn_forward_prepared.4} parent=5 // pred_check_branch
        %116 = sbr.rel (%p114) target = $region20
      $region19: #{gcn_forward_prepared.4} parent=5 // pred_region
        // Predicated region
        $region21: #{gcn_forward_prepared.4} parent=19 // pred_check
          %p117 = pneg %p32
        $region22: #{gcn_forward_prepared.4} parent=19 // pred_check_branch
          %119 = sbr.rel (%p117) target = $region24
        $region23: #{gcn_forward_prepared.4} parent=19 // pred_region
          %s120 = sand.u32 %s22, 1
          %s121 = scalar_lea.sflag [#allocation3], %s120
          %s122 = sand.u32 %s22, 1
          %s123 = smul.addr %s122, 128
          %s124 = scalar_lea.vmem [#allocation2], %s123
          %s125 = smul.u32 16, %s12
          %s127 = ssub.s32 2048, 2048
          %128 = vsyncadd %s121, %s127
          %s129 = smul.addr %s125, 128
          %s130 = scalar_lea.hbm %s0, %s129
          %s131 = sshll.u32 %s124, 4
          %s132 = int_to_ptr.vmem [resolvable:$true] %s131
          %137 = dma.hbm_to_vmem [thread:$0]  %s130, 2048, %s132, %s121, 128, 128, 8
        $region24: #{gcn_forward_prepared.4} parent=19 // pred_fallthru
          _
      $region20: #{gcn_forward_prepared.4} parent=5 // pred_fallthru
        _
      %p138 = scmp.le.s32.totalorder 1, %s12
      %p139 = scmp.lt.s32.totalorder %s12, 3
      %p140 = pnand %p138, %p139
      %p141 = pneg %p140
      // Predicated region
      $region25: #{gcn_forward_prepared.4} parent=5 // pred_check
        _
      $region26: #{gcn_forward_prepared.4} parent=5 // pred_check_branch
        %143 = sbr.rel (%p140) target = $region28
      $region27: #{gcn_forward_prepared.4} parent=5 // pred_region
        %s144 = ssub.s32 %s12, 1
        %s145 = sand.u32 %s25, 1
        %s146 = scalar_lea.sflag [#allocation3], %s145
        %s147 = sand.u32 %s25, 1
        %s148 = smul.addr %s147, 128
        %s149 = scalar_lea.vmem [#allocation2], %s148
        // Predicated region
        $region29: #{gcn_forward_prepared.4} parent=27 // pred_check
          %p150 = pneg %p38
        $region30: #{gcn_forward_prepared.4} parent=27 // pred_check_branch
          %152 = sbr.rel (%p150) target = $region32
        $region31: #{gcn_forward_prepared.4} parent=27 // pred_region
          %153 = dma.done %s146, 2048
        $region32: #{gcn_forward_prepared.4} parent=27 // pred_fallthru
          _
        // Predicated region
        $region33: #{gcn_forward_prepared.4} parent=27 // pred_check
          %p154 = pneg %p59
        $region34: #{gcn_forward_prepared.4} parent=27 // pred_check_branch
          %156 = sbr.rel (%p154) target = $region36
        $region35: #{gcn_forward_prepared.4} parent=27 // pred_region
          %157 = dma.done [#allocation5], 2048
        $region36: #{gcn_forward_prepared.4} parent=27 // pred_fallthru
          _
        %s158 = sand.u32 %s25, 1
        %s159 = scalar_lea.sflag [#allocation3], %s158
        %s160 = sand.u32 %s25, 1
        %s161 = smul.addr %s160, 128
        %s162 = scalar_lea.vmem [#allocation2], %s161
        %p163 = pneg %p38
        %p164 = pneg %p35
        %p165 = pneg %p59
        %p166 = pneg %p56
        %p167 = pneg %p85
        %p168 = pneg %p82
        %s169 = smul.u32 16, %s17
        %p170 = scmp.lt.s32.totalorder %s169, 31
        %s171 = scalar_select %p170, %s169, 31
        %s172 = smul.addr %s171, 8
        %s173 = scalar_lea.vmem %s2, %s172
        %s174 = smul.u32 16, %s17
        %s175 = smul.u32 16, %s17
        %p176 = scmp.lt.s32.totalorder %s175, 31
        %s177 = scalar_select %p176, %s175, 31
        %s178 = smul.addr %s177, 8
        %s179 = scalar_lea.vmem %s2, %s178
        %s180 = smul.u32 16, %s17
        %v181 = vld [vmem:[%s149] sm:$0xff]
        %v182 = vld [vmem:[%s149 + $0x8] sm:$0xff]
        %v183 = vld [vmem:[%s149 + $0x10] sm:$0xff]
        %v184 = vld [vmem:[%s149 + $0x18] sm:$0xff]
        %v185 = vld [vmem:[%s149 + $0x20] sm:$0xff]
        %v186 = vld [vmem:[%s149 + $0x28] sm:$0xff]
        %v187 = vld [vmem:[%s149 + $0x30] sm:$0xff]
        %v188 = vld [vmem:[%s149 + $0x38] sm:$0xff]
        %v189 = vld [vmem:[%s149 + $0x40] sm:$0xff]
        %v190 = vld [vmem:[%s149 + $0x48] sm:$0xff]
        %v191 = vld [vmem:[%s149 + $0x50] sm:$0xff]
        %v192 = vld [vmem:[%s149 + $0x58] sm:$0xff]
        %v193 = vld [vmem:[%s149 + $0x60] sm:$0xff]
        %v194 = vld [vmem:[%s149 + $0x68] sm:$0xff]
        %v195 = vld [vmem:[%s149 + $0x70] sm:$0xff]
        %v196 = vld [vmem:[%s149 + $0x78] sm:$0xff]
        %v197 = vld [vmem:[#allocation4] sm:$0xff]
        %v198 = vld [vmem:[#allocation4 + $0x8] sm:$0xff]
        %v199 = vld [vmem:[#allocation4 + $0x10] sm:$0xff]
        %v200 = vld [vmem:[#allocation4 + $0x18] sm:$0xff]
        %v201 = vld [vmem:[#allocation4 + $0x20] sm:$0xff]
        %v202 = vld [vmem:[#allocation4 + $0x28] sm:$0xff]
        %v203 = vld [vmem:[#allocation4 + $0x30] sm:$0xff]
        %v204 = vld [vmem:[#allocation4 + $0x38] sm:$0xff]
        %v205 = vld [vmem:[#allocation4 + $0x40] sm:$0xff]
        %v206 = vld [vmem:[#allocation4 + $0x48] sm:$0xff]
        %v207 = vld [vmem:[#allocation4 + $0x50] sm:$0xff]
        %v208 = vld [vmem:[#allocation4 + $0x58] sm:$0xff]
        %v209 = vld [vmem:[#allocation4 + $0x60] sm:$0xff]
        %v210 = vld [vmem:[#allocation4 + $0x68] sm:$0xff]
        %v211 = vld [vmem:[#allocation4 + $0x70] sm:$0xff]
        %v212 = vld [vmem:[#allocation4 + $0x78] sm:$0xff]
        %213 = vmatprep.subr.mxu0 0.0
        %214 = vmatpush1.msra.mxu0 %v197
        %215 = vmatprep.subr.mxu0 0.0
        %216 = vmatpush1.msra.mxu0 %v198
        %217 = vmatprep.subr.mxu0 0.0
        %218 = vmatpush1.msra.mxu0 %v199
        %219 = vmatprep.subr.mxu0 0.0
        %220 = vmatpush1.msra.mxu0 %v200
        %221 = vmatprep.subr.mxu0 0.0
        %222 = vmatpush1.msra.mxu0 %v201
        %223 = vmatprep.subr.mxu0 0.0
        %224 = vmatpush1.msra.mxu0 %v202
        %225 = vmatprep.subr.mxu0 0.0
        %226 = vmatpush1.msra.mxu0 %v203
        %227 = vmatprep.subr.mxu0 0.0
        %228 = vmatpush1.msra.mxu0 %v204
        %229 = vmatprep.subr.mxu0 0.0
        %230 = vmatpush1.msra.mxu0 %v205
        %231 = vmatprep.subr.mxu0 0.0
        %232 = vmatpush1.msra.mxu0 %v206
        %233 = vmatprep.subr.mxu0 0.0
        %234 = vmatpush1.msra.mxu0 %v207
        %235 = vmatprep.subr.mxu0 0.0
        %236 = vmatpush1.msra.mxu0 %v208
        %237 = vmatprep.subr.mxu0 0.0
        %238 = vmatpush1.msra.mxu0 %v209
        %239 = vmatprep.subr.mxu0 0.0
        %240 = vmatpush1.msra.mxu0 %v210
        %241 = vmatprep.subr.mxu0 0.0
        %242 = vmatpush1.msra.mxu0 %v211
        %243 = vmatprep.subr.mxu0 0.0
        %244 = vmatpush1.msra.mxu0 %v212
        %245 = vmatprep.subr.mxu0 0.0
        %246 = vmatpush1.msra.mxu0 0.0
        %247 = vmatprep.subr.mxu0 0.0
        %248 = vmatpush1.msra.mxu0 0.0
        %249 = vmatprep.subr.mxu0 0.0
        %250 = vmatpush1.msra.mxu0 0.0
        %251 = vmatprep.subr.mxu0 0.0
        %252 = vmatpush1.msra.mxu0 0.0
        %253 = vmatprep.subr.mxu0 0.0
        %254 = vmatpush1.msra.mxu0 0.0
        %255 = vmatprep.subr.mxu0 0.0
        %256 = vmatpush1.msra.mxu0 0.0
        %257 = vmatprep.subr.mxu0 0.0
        %258 = vmatpush1.msra.mxu0 0.0
        %259 = vmatprep.subr.mxu0 0.0
        %260 = vmatpush1.msra.mxu0 0.0
        %261 = vmatprep.subr.mxu0 0.0
        %262 = vmatpush1.msra.mxu0 0.0
        %263 = vmatprep.subr.mxu0 0.0
        %264 = vmatpush1.msra.mxu0 0.0
        %265 = vmatprep.subr.mxu0 0.0
        %266 = vmatpush1.msra.mxu0 0.0
        %267 = vmatprep.subr.mxu0 0.0
        %268 = vmatpush1.msra.mxu0 0.0
        %269 = vmatprep.subr.mxu0 0.0
        %270 = vmatpush1.msra.mxu0 0.0
        %271 = vmatprep.subr.mxu0 0.0
        %272 = vmatpush1.msra.mxu0 0.0
        %273 = vmatprep.subr.mxu0 0.0
        %274 = vmatpush1.msra.mxu0 0.0
        %275 = vmatprep.subr.mxu0 0.0
        %276 = vmatpush1.msra.mxu0 0.0
        %277 = vmatprep.mubr.f32.mxu0 0.0
        %278 = vmatmul.mubr.f32.gmra.mrb[0].mxu0 %v181
        %v279 = vpop.f32.mrb[0].mxu0
        %v280 = vadd.f32 0.0, %v279
        %v281 = vpop.f32.mrb[0].mxu0
        %282 = vmatprep.mubr.f32.mxu0 0.0
        %283 = vmatmul.mubr.f32.gmra.mrb[0].mxu0 %v182
        %v284 = vpop.f32.mrb[0].mxu0
        %v285 = vadd.f32 0.0, %v284
        %v286 = vpop.f32.mrb[0].mxu0
        %287 = vmatprep.mubr.f32.mxu0 0.0
        %288 = vmatmul.mubr.f32.gmra.mrb[0].mxu0 %v183
        %v289 = vpop.f32.mrb[0].mxu0
        %v290 = vadd.f32 0.0, %v289
        %v291 = vpop.f32.mrb[0].mxu0
        %292 = vmatprep.mubr.f32.mxu0 0.0
        %293 = vmatmul.mubr.f32.gmra.mrb[0].mxu0 %v184
        %v294 = vpop.f32.mrb[0].mxu0
        %v295 = vadd.f32 0.0, %v294
        %v296 = vpop.f32.mrb[0].mxu0
        %297 = vmatprep.mubr.f32.mxu0 0.0
        %298 = vmatmul.mubr.f32.gmra.mrb[0].mxu0 %v185
        %v299 = vpop.f32.mrb[0].mxu0
        %v300 = vadd.f32 0.0, %v299
        %v301 = vpop.f32.mrb[0].mxu0
        %302 = vmatprep.mubr.f32.mxu0 0.0
        %303 = vmatmul.mubr.f32.gmra.mrb[0].mxu0 %v186
        %v304 = vpop.f32.mrb[0].mxu0
        %v305 = vadd.f32 0.0, %v304
        %v306 = vpop.f32.mrb[0].mxu0
        %307 = vmatprep.mubr.f32.mxu0 0.0
        %308 = vmatmul.mubr.f32.gmra.mrb[0].mxu0 %v187
        %v309 = vpop.f32.mrb[0].mxu0
        %v310 = vadd.f32 0.0, %v309
        %v311 = vpop.f32.mrb[0].mxu0
        %312 = vmatprep.mubr.f32.mxu0 0.0
        %313 = vmatmul.mubr.f32.gmra.mrb[0].mxu0 %v188
        %v314 = vpop.f32.mrb[0].mxu0
        %v315 = vadd.f32 0.0, %v314
        %v316 = vpop.f32.mrb[0].mxu0
        %317 = vmatprep.mubr.f32.mxu0 0.0
        %318 = vmatmul.mubr.f32.gmra.mrb[0].mxu0 %v189
        %v319 = vpop.f32.mrb[0].mxu0
        %v320 = vadd.f32 0.0, %v319
        %v321 = vpop.f32.mrb[0].mxu0
        %322 = vmatprep.mubr.f32.mxu0 0.0
        %323 = vmatmul.mubr.f32.gmra.mrb[0].mxu0 %v190
        %v324 = vpop.f32.mrb[0].mxu0
        %v325 = vadd.f32 0.0, %v324
        %v326 = vpop.f32.mrb[0].mxu0
        %327 = vmatprep.mubr.f32.mxu0 0.0
        %328 = vmatmul.mubr.f32.gmra.mrb[0].mxu0 %v191
        %v329 = vpop.f32.mrb[0].mxu0
        %v330 = vadd.f32 0.0, %v329
        %v331 = vpop.f32.mrb[0].mxu0
        %332 = vmatprep.mubr.f32.mxu0 0.0
        %333 = vmatmul.mubr.f32.gmra.mrb[0].mxu0 %v192
        %v334 = vpop.f32.mrb[0].mxu0
        %v335 = vadd.f32 0.0, %v334
        %v336 = vpop.f32.mrb[0].mxu0
        %337 = vmatprep.mubr.f32.mxu0 0.0
        %338 = vmatmul.mubr.f32.gmra.mrb[0].mxu0 %v193
        %v339 = vpop.f32.mrb[0].mxu0
        %v340 = vadd.f32 0.0, %v339
        %v341 = vpop.f32.mrb[0].mxu0
        %342 = vmatprep.mubr.f32.mxu0 0.0
        %343 = vmatmul.mubr.f32.gmra.mrb[0].mxu0 %v194
        %v344 = vpop.f32.mrb[0].mxu0
        %v345 = vadd.f32 0.0, %v344
        %v346 = vpop.f32.mrb[0].mxu0
        %347 = vmatprep.mubr.f32.mxu0 0.0
        %348 = vmatmul.mubr.f32.gmra.mrb[0].mxu0 %v195
        %v349 = vpop.f32.mrb[0].mxu0
        %v350 = vadd.f32 0.0, %v349
        %v351 = vpop.f32.mrb[0].mxu0
        %352 = vmatprep.mubr.f32.mxu0 0.0
        %353 = vmatmul.mubr.f32.gmra.mrb[0].mxu0 %v196
        %v354 = vpop.f32.mrb[0].mxu0
        %v355 = vadd.f32 0.0, %v354
        %v356 = vpop.f32.mrb[0].mxu0
        %357 = vdwg.mxu0
        %358 = vst [vmem:[%s179] sm:$0xff] %v280
        %359 = vst [vmem:[%s179 + $0x8] sm:$0xff] %v285
        %360 = vst [vmem:[%s179 + $0x10] sm:$0xff] %v290
        %361 = vst [vmem:[%s179 + $0x18] sm:$0xff] %v295
        %362 = vst [vmem:[%s179 + $0x20] sm:$0xff] %v300
        %363 = vst [vmem:[%s179 + $0x28] sm:$0xff] %v305
        %364 = vst [vmem:[%s179 + $0x30] sm:$0xff] %v310
        %365 = vst [vmem:[%s179 + $0x38] sm:$0xff] %v315
        %366 = vst [vmem:[%s179 + $0x40] sm:$0xff] %v320
        %367 = vst [vmem:[%s179 + $0x48] sm:$0xff] %v325
        %368 = vst [vmem:[%s179 + $0x50] sm:$0xff] %v330
        %369 = vst [vmem:[%s179 + $0x58] sm:$0xff] %v335
        %370 = vst [vmem:[%s179 + $0x60] sm:$0xff] %v340
        %371 = vst [vmem:[%s179 + $0x68] sm:$0xff] %v345
        %372 = vst [vmem:[%s179 + $0x70] sm:$0xff] %v350
        %373 = vst [vmem:[%s179 + $0x78] sm:$0xff] %v355
        %s374 = smul.u32 16, %s17
        %p375 = scmp.lt.s32.totalorder %s374, 31
        %s376 = scalar_select %p375, %s374, 31
        %s377 = smul.addr %s376, 8
        %s378 = scalar_lea.vmem %s2, %s377
        // Predicated region
        $region37: #{gcn_forward_prepared.4} parent=27 // pred_check
          %p379 = pneg %p82
        $region38: #{gcn_forward_prepared.4} parent=27 // pred_check_branch
          %381 = sbr.rel (%p379) target = $region40
        $region39: #{gcn_forward_prepared.4} parent=27 // pred_region
          %s382 = smul.u32 16, %s17
        $region40: #{gcn_forward_prepared.4} parent=27 // pred_fallthru
          _
      $region28: #{gcn_forward_prepared.4} parent=5 // pred_fallthru
        _
      %p383 = scmp.le.s32.totalorder 2, %s12
      // Predicated region
      $region41: #{gcn_forward_prepared.4} parent=5 // pred_check
        %p384 = pneg %p383
      $region42: #{gcn_forward_prepared.4} parent=5 // pred_check_branch
        %386 = sbr.rel (%p384) target = $region44
      $region43: #{gcn_forward_prepared.4} parent=5 // pred_region
        %s387 = ssub.s32 %s12, 2
        // Predicated region
        $region45: #{gcn_forward_prepared.4} parent=43 // pred_check
          %p388 = pneg %p88
        $region46: #{gcn_forward_prepared.4} parent=43 // pred_check_branch
          %390 = sbr.rel (%p388) target = $region48
        $region47: #{gcn_forward_prepared.4} parent=43 // pred_region
          %s391 = smul.u32 16, %s18
          %p392 = scmp.lt.s32.totalorder %s391, 31
          %s393 = scalar_select %p392, %s391, 31
          %s394 = smul.addr %s393, 8
          %s395 = scalar_lea.vmem %s2, %s394
        $region48: #{gcn_forward_prepared.4} parent=43 // pred_fallthru
          _
      $region44: #{gcn_forward_prepared.4} parent=5 // pred_fallthru
        _
    $region6: #{gcn_forward_prepared.4} parent=1 // loop_footer
      %s16 = sadd.s32 1, %s12
    $region7: #{gcn_forward_prepared.4} parent=1 // loop_footer_branch
      %11 = sbr.rel target = $region3
    $region8: #{gcn_forward_prepared.4} parent=1 // loop_exit
      _
    %396 = vsyncpa [#allocation3], 1
    %s397 = scalar_lea.sflag [#allocation3], 1
    %398 = vsyncpa %s397, 1
    %399 = vsyncpa [#allocation5], 1

// kernel: gcn_forward_prepared.5
$region0: #{gcn_forward_prepared.5}
  #allocation0 [shape = 'u32[]', space=smem, size = 0x4, offset = 0x4, fixed_abs, tag = 'smem constant byte address 0x4 - core index']
  #allocation1 [shape = 'u32[144,128]{1,0:T(1,128)}', space=vmem, size = 0x12000, scoped, tag = 'internal scratch']
  %s0 = inlined_call_operand.vmem [shape: bf16[256,256], index: 0, kind: input, shape index: {}]
  %s1 = inlined_call_operand.vmem [shape: f32[256,128], index: 1, kind: input, shape index: {}]
  %s2 = inlined_call_operand.vmem [shape: f32[1,128], index: 2, kind: input, shape index: {}]
  %s3 = inlined_call_operand.vmem [shape: f32[256,128], index: 3, kind: output, shape index: {}]
  %s4 = sld [smem:[#allocation0]]
  $region45: #{gcn_forward_prepared.5} parent=0
    _
  %s6 = ssub.s32 1, %s4
  %s7 = scalar_select 0, %s6, %s4
  loop: start=0, step=1, limit=4
  $region2: #{gcn_forward_prepared.5} parent=0 // loop_pre_header
    _
  $region3: #{gcn_forward_prepared.5} parent=0 // loop_header
    %s9 = sphi 0, %s13
    %p10 = scmp.ge.s32.totalorder %s9, 4
    %s19 = sphi 0, %s21
    %s22 = sphi 0, %s19
    %s23 = sphi 0, %s22
    %s39 = sphi 0, %s23
    %s43 = sphi 0, %s43
    %s45 = sphi 0, %s43
    %s46 = sphi 0, %s45
    %s60 = sphi 0, %s46
    %s64 = sphi 0, %s64
    %s66 = sphi 0, %s64
    %s67 = sphi 0, %s66
    %s81 = sphi 0, %s67
    %s87 = sphi 0, %s89
    %s90 = sphi 0, %s87
    %s91 = sphi 0, %s90
    %s107 = sphi 0, %s91
  $region4: #{gcn_forward_prepared.5} parent=0 // loop_header_branch
    %12 = sbr.rel (%p10) target = $region8
  $region5: #{gcn_forward_prepared.5} parent=0 // loop_body
    %s14 = ssub.s32 %s9, 1
    %s15 = ssub.s32 %s9, 2
    %s16 = sadd.s32 %s9, 1
    %s17 = ssub.s32 %s9, %s16
    %p18 = scmp.eq.s32.totalorder %s17, 0
    %s20 = sadd.s32 %s19, 1
    %s21 = scalar_select %p18, %s19, %s20
    %p24 = pneg %p18
    %p25 = scmp.eq.s32.totalorder %s9, 1
    %p26 = por %p24, %p25
    %p27 = scmp.ne.s32.totalorder %s19, %s22
    %p28 = scmp.eq.s32.totalorder %s9, 0
    %p29 = por %p27, %p28
    %p30 = scmp.ne.s32.totalorder %s19, %s22
    %p31 = scmp.eq.s32.totalorder %s14, 1
    %p32 = por %p30, %p31
    %p33 = scmp.ne.s32.totalorder %s22, %s23
    %p34 = scmp.eq.s32.totalorder %s14, 0
    %p35 = por %p33, %p34
    %p36 = scmp.ne.s32.totalorder %s22, %s23
    %p37 = scmp.eq.s32.totalorder %s15, 1
    %p38 = por %p36, %p37
    %p40 = scmp.ne.s32.totalorder %s23, %s39
    %p41 = scmp.eq.s32.totalorder %s15, 0
    %p42 = por %p40, %p41
    %s44 = sadd.s32 %s43, 1
    %p47 = scmp.eq.s32.totalorder %s9, 1
    %p48 = scmp.ne.s32.totalorder %s43, %s45
    %p49 = scmp.eq.s32.totalorder %s9, 0
    %p50 = por %p48, %p49
    %p51 = scmp.ne.s32.totalorder %s43, %s45
    %p52 = scmp.eq.s32.totalorder %s14, 1
    %p53 = por %p51, %p52
    %p54 = scmp.ne.s32.totalorder %s45, %s46
    %p55 = scmp.eq.s32.totalorder %s14, 0
    %p56 = por %p54, %p55
    %p57 = scmp.ne.s32.totalorder %s45, %s46
    %p58 = scmp.eq.s32.totalorder %s15, 1
    %p59 = por %p57, %p58
    %p61 = scmp.ne.s32.totalorder %s46, %s60
    %p62 = scmp.eq.s32.totalorder %s15, 0
    %p63 = por %p61, %p62
    %s65 = sadd.s32 %s64, 1
    %p68 = scmp.eq.s32.totalorder %s9, 1
    %p69 = scmp.ne.s32.totalorder %s64, %s66
    %p70 = scmp.eq.s32.totalorder %s9, 0
    %p71 = por %p69, %p70
    %p72 = scmp.ne.s32.totalorder %s64, %s66
    %p73 = scmp.eq.s32.totalorder %s14, 1
    %p74 = por %p72, %p73
    %p75 = scmp.ne.s32.totalorder %s66, %s67
    %p76 = scmp.eq.s32.totalorder %s14, 0
    %p77 = por %p75, %p76
    %p78 = scmp.ne.s32.totalorder %s66, %s67
    %p79 = scmp.eq.s32.totalorder %s15, 1
    %p80 = por %p78, %p79
    %p82 = scmp.ne.s32.totalorder %s67, %s81
    %p83 = scmp.eq.s32.totalorder %s15, 0
    %p84 = por %p82, %p83
    %s85 = ssub.s32 %s9, %s16
    %p86 = scmp.eq.s32.totalorder %s85, 0
    %s88 = sadd.s32 %s87, 1
    %s89 = scalar_select %p86, %s87, %s88
    %p92 = pneg %p86
    %p93 = scmp.eq.s32.totalorder %s9, 1
    %p94 = por %p92, %p93
    %p95 = scmp.ne.s32.totalorder %s87, %s90
    %p96 = scmp.eq.s32.totalorder %s9, 0
    %p97 = por %p95, %p96
    %p98 = scmp.ne.s32.totalorder %s87, %s90
    %p99 = scmp.eq.s32.totalorder %s14, 1
    %p100 = por %p98, %p99
    %p101 = scmp.ne.s32.totalorder %s90, %s91
    %p102 = scmp.eq.s32.totalorder %s14, 0
    %p103 = por %p101, %p102
    %p104 = scmp.ne.s32.totalorder %s90, %s91
    %p105 = scmp.eq.s32.totalorder %s15, 1
    %p106 = por %p104, %p105
    %p108 = scmp.ne.s32.totalorder %s91, %s107
    %p109 = scmp.eq.s32.totalorder %s15, 0
    %p110 = por %p108, %p109
    %p111 = scmp.le.s32.totalorder 1, %s9
    %p112 = scmp.lt.s32.totalorder %s9, 3
    %p113 = pnand %p111, %p112
    %p114 = pneg %p113
    // Predicated region
    $region9: #{gcn_forward_prepared.5} parent=5 // pred_check
      _
    $region10: #{gcn_forward_prepared.5} parent=5 // pred_check_branch
      %116 = sbr.rel (%p113) target = $region12
    $region11: #{gcn_forward_prepared.5} parent=5 // pred_region
      %s117 = ssub.s32 %s9, 1
      // Predicated region
      $region13: #{gcn_forward_prepared.5} parent=11 // pred_check
        %p118 = pneg %p56
      $region14: #{gcn_forward_prepared.5} parent=11 // pred_check_branch
        %120 = sbr.rel (%p118) target = $region16
      $region15: #{gcn_forward_prepared.5} parent=11 // pred_region
        _
      $region16: #{gcn_forward_prepared.5} parent=11 // pred_fallthru
        _
      // Predicated region
      $region17: #{gcn_forward_prepared.5} parent=11 // pred_check
        %p121 = pneg %p77
      $region18: #{gcn_forward_prepared.5} parent=11 // pred_check_branch
        %123 = sbr.rel (%p121) target = $region20
      $region19: #{gcn_forward_prepared.5} parent=11 // pred_region
        _
      $region20: #{gcn_forward_prepared.5} parent=11 // pred_fallthru
        _
    $region12: #{gcn_forward_prepared.5} parent=5 // pred_fallthru
      _
    %p124 = scmp.lt.s32.totalorder %s9, 2
    // Predicated region
    $region21: #{gcn_forward_prepared.5} parent=5 // pred_check
      %p125 = pneg %p124
    $region22: #{gcn_forward_prepared.5} parent=5 // pred_check_branch
      %127 = sbr.rel (%p125) target = $region24
    $region23: #{gcn_forward_prepared.5} parent=5 // pred_region
      // Predicated region
      $region25: #{gcn_forward_prepared.5} parent=23 // pred_check
        %p128 = pneg %p29
      $region26: #{gcn_forward_prepared.5} parent=23 // pred_check_branch
        %130 = sbr.rel (%p128) target = $region28
      $region27: #{gcn_forward_prepared.5} parent=23 // pred_region
        %s131 = smul.u32 16, %s9
        %p132 = scmp.lt.s32.totalorder %s131, 31
        %s133 = scalar_select %p132, %s131, 31
        %s134 = smul.addr %s133, 2
        %s135 = smul.addr %s134, 4
        %s136 = scalar_lea.vmem %s0, %s135
        %s137 = smul.u32 16, %s9
      $region28: #{gcn_forward_prepared.5} parent=23 // pred_fallthru
        _
    $region24: #{gcn_forward_prepared.5} parent=5 // pred_fallthru
      _
    %p138 = scmp.le.s32.totalorder 1, %s9
    %p139 = scmp.lt.s32.totalorder %s9, 3
    %p140 = pnand %p138, %p139
    %p141 = pneg %p140
    // Predicated region
    $region29: #{gcn_forward_prepared.5} parent=5 // pred_check
      _
    $region30: #{gcn_forward_prepared.5} parent=5 // pred_check_branch
      %143 = sbr.rel (%p140) target = $region32
    $region31: #{gcn_forward_prepared.5} parent=5 // pred_region
      %s144 = ssub.s32 %s9, 1
      %s145 = smul.u32 16, %s14
      %p146 = scmp.lt.s32.totalorder %s145, 31
      %s147 = scalar_select %p146, %s145, 31
      %s148 = smul.addr %s147, 2
      %s149 = smul.addr %s148, 4
      %s150 = scalar_lea.vmem %s0, %s149
      %p151 = pneg %p35
      %p152 = pneg %p32
      %p153 = pneg %p56
      %p154 = pneg %p53
      %p155 = pneg %p77
      %p156 = pneg %p74
      %p157 = pneg %p103
      %p158 = pneg %p100
      %s159 = smul.u32 16, %s14
      %p160 = scmp.lt.s32.totalorder %s159, 31
      %s161 = scalar_select %p160, %s159, 31
      %s162 = smul.addr %s161, 8
      %s163 = scalar_lea.vmem %s3, %s162
      %s164 = smul.u32 16, %s14
      %p165 = scmp.lt.s32.totalorder %s164, 31
      %s166 = scalar_select %p165, %s164, 31
      %s167 = smul.addr %s166, 2
      %s168 = smul.addr %s167, 4
      %s169 = scalar_lea.vmem %s0, %s168
      %s170 = smul.u32 16, %s14
      %s171 = smul.u32 16, %s14
      %p172 = scmp.lt.s32.totalorder %s171, 31
      %s173 = scalar_select %p172, %s171, 31
      %s174 = smul.addr %s173, 8
      %s175 = scalar_lea.vmem %s3, %s174
      %s176 = smul.u32 16, %s14
      %v177 = vld [vmem:[%s169] sm:$0xff]
      %v178 = vld [vmem:[%s169 + $0x8] sm:$0xff]
      %v179 = vld [vmem:[%s169 + $0x10] sm:$0xff]
      %v180 = vld [vmem:[%s169 + $0x18] sm:$0xff]
      %v181 = vld [vmem:[%s169 + $0x20] sm:$0xff]
      %v182 = vld [vmem:[%s169 + $0x28] sm:$0xff]
      %v183 = vld [vmem:[%s169 + $0x30] sm:$0xff]
      %v184 = vld [vmem:[%s169 + $0x38] sm:$0xff]
      %v185 = vld [vmem:[%s169 + $0x40] sm:$0xff]
      %v186 = vld [vmem:[%s169 + $0x48] sm:$0xff]
      %v187 = vld [vmem:[%s169 + $0x50] sm:$0xff]
      %v188 = vld [vmem:[%s169 + $0x58] sm:$0xff]
      %v189 = vld [vmem:[%s169 + $0x60] sm:$0xff]
      %v190 = vld [vmem:[%s169 + $0x68] sm:$0xff]
      %v191 = vld [vmem:[%s169 + $0x70] sm:$0xff]
      %v192 = vld [vmem:[%s169 + $0x78] sm:$0xff]
      %v193 = vld [vmem:[%s1] sm:$0xff]
      %v194 = vld [vmem:[%s1 + $0x8] sm:$0xff]
      %v195 = vld [vmem:[%s1 + $0x10] sm:$0xff]
      %v196 = vld [vmem:[%s1 + $0x18] sm:$0xff]
      %v197 = vld [vmem:[%s1 + $0x20] sm:$0xff]
      %v198 = vld [vmem:[%s1 + $0x28] sm:$0xff]
      %v199 = vld [vmem:[%s1 + $0x30] sm:$0xff]
      %v200 = vld [vmem:[%s1 + $0x38] sm:$0xff]
      %v201 = vld [vmem:[%s1 + $0x40] sm:$0xff]
      %v202 = vld [vmem:[%s1 + $0x48] sm:$0xff]
      %v203 = vld [vmem:[%s1 + $0x50] sm:$0xff]
      %v204 = vld [vmem:[%s1 + $0x58] sm:$0xff]
      %v205 = vld [vmem:[%s1 + $0x60] sm:$0xff]
      %v206 = vld [vmem:[%s1 + $0x68] sm:$0xff]
      %v207 = vld [vmem:[%s1 + $0x70] sm:$0xff]
      %v208 = vld [vmem:[%s1 + $0x78] sm:$0xff]
      %v209 = vld [vmem:[%s1 + $0x80] sm:$0xff]
      %v210 = vld [vmem:[%s1 + $0x88] sm:$0xff]
      %v211 = vld [vmem:[%s1 + $0x90] sm:$0xff]
      %v212 = vld [vmem:[%s1 + $0x98] sm:$0xff]
      %v213 = vld [vmem:[%s1 + $0xa0] sm:$0xff]
      %v214 = vld [vmem:[%s1 + $0xa8] sm:$0xff]
      %v215 = vld [vmem:[%s1 + $0xb0] sm:$0xff]
      %v216 = vld [vmem:[%s1 + $0xb8] sm:$0xff]
      %v217 = vld [vmem:[%s1 + $0xc0] sm:$0xff]
      %v218 = vld [vmem:[%s1 + $0xc8] sm:$0xff]
      %v219 = vld [vmem:[%s1 + $0xd0] sm:$0xff]
      %v220 = vld [vmem:[%s1 + $0xd8] sm:$0xff]
      %v221 = vld [vmem:[%s1 + $0xe0] sm:$0xff]
      %v222 = vld [vmem:[%s1 + $0xe8] sm:$0xff]
      %v223 = vld [vmem:[%s1 + $0xf0] sm:$0xff]
      %v224 = vld [vmem:[%s1 + $0xf8] sm:$0xff]
      %v225 = vld [vmem:[%s2] sm:$0x1]
      %v227 = vlaneseq
      %v228 = vshrl.u32 %v227, 7
      %v229 = vsub.s32 0, %v228
      %v230 = vrot.slane %v225, %v229
      %v248 = vunpack.c.l.b16 %v177
      %v249 = vunpack.c.h.b16 %v177
      %v250 = vunpack.c.l.b16 %v178
      %v251 = vunpack.c.h.b16 %v178
      %v252 = vunpack.c.l.b16 %v179
      %v253 = vunpack.c.h.b16 %v179
      %v254 = vunpack.c.l.b16 %v180
      %v255 = vunpack.c.h.b16 %v180
      %v256 = vunpack.c.l.b16 %v181
      %v257 = vunpack.c.h.b16 %v181
      %v258 = vunpack.c.l.b16 %v182
      %v259 = vunpack.c.h.b16 %v182
      %v260 = vunpack.c.l.b16 %v183
      %v261 = vunpack.c.h.b16 %v183
      %v262 = vunpack.c.l.b16 %v184
      %v263 = vunpack.c.h.b16 %v184
      %v264 = vunpack.c.l.b16 %v185
      %v265 = vunpack.c.h.b16 %v185
      %v266 = vunpack.c.l.b16 %v186
      %v267 = vunpack.c.h.b16 %v186
      %v268 = vunpack.c.l.b16 %v187
      %v269 = vunpack.c.h.b16 %v187
      %v270 = vunpack.c.l.b16 %v188
      %v271 = vunpack.c.h.b16 %v188
      %v272 = vunpack.c.l.b16 %v189
      %v273 = vunpack.c.h.b16 %v189
      %v274 = vunpack.c.l.b16 %v190
      %v275 = vunpack.c.h.b16 %v190
      %v276 = vunpack.c.l.b16 %v191
      %v277 = vunpack.c.h.b16 %v191
      %v278 = vunpack.c.l.b16 %v192
      %v279 = vunpack.c.h.b16 %v192
      %v280 = vpack.c.b16 %v250, %v248
      %v281 = vpack.c.b16 %v251, %v249
      %v282 = vpack.c.b16 %v254, %v252
      %v283 = vpack.c.b16 %v255, %v253
      %v284 = vpack.c.b16 %v258, %v256
      %v285 = vpack.c.b16 %v259, %v257
      %v286 = vpack.c.b16 %v262, %v260
      %v287 = vpack.c.b16 %v263, %v261
      %v288 = vpack.c.b16 %v266, %v264
      %v289 = vpack.c.b16 %v267, %v265
      %v290 = vpack.c.b16 %v270, %v268
      %v291 = vpack.c.b16 %v271, %v269
      %v292 = vpack.c.b16 %v274, %v272
      %v293 = vpack.c.b16 %v275, %v273
      %v294 = vpack.c.b16 %v278, %v276
      %v295 = vpack.c.b16 %v279, %v277
      %312 = vmatprep.subr.mxu0 0.0
      %313 = vmatpush1.msra.mxu0 %v193
      %314 = vmatprep.subr.mxu0 0.0
      %315 = vmatpush1.msra.mxu0 %v194
      %316 = vmatprep.subr.mxu0 0.0
      %317 = vmatpush1.msra.mxu0 %v195
      %318 = vmatprep.subr.mxu0 0.0
      %319 = vmatpush1.msra.mxu0 %v196
      %320 = vmatprep.subr.mxu0 0.0
      %321 = vmatpush1.msra.mxu0 %v197
      %322 = vmatprep.subr.mxu0 0.0
      %323 = vmatpush1.msra.mxu0 %v198
      %324 = vmatprep.subr.mxu0 0.0
      %325 = vmatpush1.msra.mxu0 %v199
      %326 = vmatprep.subr.mxu0 0.0
      %327 = vmatpush1.msra.mxu0 %v200
      %328 = vmatprep.subr.mxu0 0.0
      %329 = vmatpush1.msra.mxu0 %v201
      %330 = vmatprep.subr.mxu0 0.0
      %331 = vmatpush1.msra.mxu0 %v202
      %332 = vmatprep.subr.mxu0 0.0
      %333 = vmatpush1.msra.mxu0 %v203
      %334 = vmatprep.subr.mxu0 0.0
      %335 = vmatpush1.msra.mxu0 %v204
      %336 = vmatprep.subr.mxu0 0.0
      %337 = vmatpush1.msra.mxu0 %v205
      %338 = vmatprep.subr.mxu0 0.0
      %339 = vmatpush1.msra.mxu0 %v206
      %340 = vmatprep.subr.mxu0 0.0
      %341 = vmatpush1.msra.mxu0 %v207
      %342 = vmatprep.subr.mxu0 0.0
      %343 = vmatpush1.msra.mxu0 %v208
      %344 = vmatprep.subr.mxu0 0.0
      %345 = vmatpush1.msra.mxu0 %v209
      %346 = vmatprep.subr.mxu0 0.0
      %347 = vmatpush1.msra.mxu0 %v210
      %348 = vmatprep.subr.mxu0 0.0
      %349 = vmatpush1.msra.mxu0 %v211
      %350 = vmatprep.subr.mxu0 0.0
      %351 = vmatpush1.msra.mxu0 %v212
      %352 = vmatprep.subr.mxu0 0.0
      %353 = vmatpush1.msra.mxu0 %v213
      %354 = vmatprep.subr.mxu0 0.0
      %355 = vmatpush1.msra.mxu0 %v214
      %356 = vmatprep.subr.mxu0 0.0
      %357 = vmatpush1.msra.mxu0 %v215
      %358 = vmatprep.subr.mxu0 0.0
      %359 = vmatpush1.msra.mxu0 %v216
      %360 = vmatprep.subr.mxu0 0.0
      %361 = vmatpush1.msra.mxu0 %v217
      %362 = vmatprep.subr.mxu0 0.0
      %363 = vmatpush1.msra.mxu0 %v218
      %364 = vmatprep.subr.mxu0 0.0
      %365 = vmatpush1.msra.mxu0 %v219
      %366 = vmatprep.subr.mxu0 0.0
      %367 = vmatpush1.msra.mxu0 %v220
      %368 = vmatprep.subr.mxu0 0.0
      %369 = vmatpush1.msra.mxu0 %v221
      %370 = vmatprep.subr.mxu0 0.0
      %371 = vmatpush1.msra.mxu0 %v222
      %372 = vmatprep.subr.mxu0 0.0
      %373 = vmatpush1.msra.mxu0 %v223
      %374 = vmatprep.subr.mxu0 0.0
      %375 = vmatpush1.msra.mxu0 %v224
      %376 = vmatprep.mubr.bf16.mxu0 %v281
      %377 = vmatmul.mubr.bf16.gmra.mrb[0].mxu0 %v280
      %v378 = vpop.f32.mrb[0].mxu0
      %v379 = vadd.f32 %v230, %v378
      %v380 = vpop.f32.mrb[0].mxu0
      %v381 = vpop.f32.mrb[0].mxu0
      %v382 = vadd.f32 %v230, %v381
      %v383 = vpop.f32.mrb[0].mxu0
      %384 = vmatprep.mubr.bf16.mxu0 %v283
      %385 = vmatmul.mubr.bf16.gmra.mrb[0].mxu0 %v282
      %v386 = vpop.f32.mrb[0].mxu0
      %v387 = vadd.f32 %v230, %v386
      %v388 = vpop.f32.mrb[0].mxu0
      %v389 = vpop.f32.mrb[0].mxu0
      %v390 = vadd.f32 %v230, %v389
      %v391 = vpop.f32.mrb[0].mxu0
      %392 = vmatprep.mubr.bf16.mxu0 %v285
      %393 = vmatmul.mubr.bf16.gmra.mrb[0].mxu0 %v284
      %v394 = vpop.f32.mrb[0].mxu0
      %v395 = vadd.f32 %v230, %v394
      %v396 = vpop.f32.mrb[0].mxu0
      %v397 = vpop.f32.mrb[0].mxu0
      %v398 = vadd.f32 %v230, %v397
      %v399 = vpop.f32.mrb[0].mxu0
      %400 = vmatprep.mubr.bf16.mxu0 %v287
      %401 = vmatmul.mubr.bf16.gmra.mrb[0].mxu0 %v286
      %v402 = vpop.f32.mrb[0].mxu0
      %v403 = vadd.f32 %v230, %v402
      %v404 = vpop.f32.mrb[0].mxu0
      %v405 = vpop.f32.mrb[0].mxu0
      %v406 = vadd.f32 %v230, %v405
      %v407 = vpop.f32.mrb[0].mxu0
      %408 = vmatprep.mubr.bf16.mxu0 %v289
      %409 = vmatmul.mubr.bf16.gmra.mrb[0].mxu0 %v288
      %v410 = vpop.f32.mrb[0].mxu0
      %v411 = vadd.f32 %v230, %v410
      %v412 = vpop.f32.mrb[0].mxu0
      %v413 = vpop.f32.mrb[0].mxu0
      %v414 = vadd.f32 %v230, %v413
      %v415 = vpop.f32.mrb[0].mxu0
      %416 = vmatprep.mubr.bf16.mxu0 %v291
      %417 = vmatmul.mubr.bf16.gmra.mrb[0].mxu0 %v290
      %v418 = vpop.f32.mrb[0].mxu0
      %v419 = vadd.f32 %v230, %v418
      %v420 = vpop.f32.mrb[0].mxu0
      %v421 = vpop.f32.mrb[0].mxu0
      %v422 = vadd.f32 %v230, %v421
      %v423 = vpop.f32.mrb[0].mxu0
      %424 = vmatprep.mubr.bf16.mxu0 %v293
      %425 = vmatmul.mubr.bf16.gmra.mrb[0].mxu0 %v292
      %v426 = vpop.f32.mrb[0].mxu0
      %v427 = vadd.f32 %v230, %v426
      %v428 = vpop.f32.mrb[0].mxu0
      %v429 = vpop.f32.mrb[0].mxu0
      %v430 = vadd.f32 %v230, %v429
      %v431 = vpop.f32.mrb[0].mxu0
      %432 = vmatprep.mubr.bf16.mxu0 %v295
      %433 = vmatmul.mubr.bf16.gmra.mrb[0].mxu0 %v294
      %v434 = vpop.f32.mrb[0].mxu0
      %v435 = vadd.f32 %v230, %v434
      %v436 = vpop.f32.mrb[0].mxu0
      %v437 = vpop.f32.mrb[0].mxu0
      %v438 = vadd.f32 %v230, %v437
      %v439 = vpop.f32.mrb[0].mxu0
      %440 = vdwg.mxu0
      %v441 = vmax.f32 %v379, 0.0
      %v442 = vmax.f32 %v382, 0.0
      %v443 = vmax.f32 %v387, 0.0
      %v444 = vmax.f32 %v390, 0.0
      %v445 = vmax.f32 %v395, 0.0
      %v446 = vmax.f32 %v398, 0.0
      %v447 = vmax.f32 %v403, 0.0
      %v448 = vmax.f32 %v406, 0.0
      %v449 = vmax.f32 %v411, 0.0
      %v450 = vmax.f32 %v414, 0.0
      %v451 = vmax.f32 %v419, 0.0
      %v452 = vmax.f32 %v422, 0.0
      %v453 = vmax.f32 %v427, 0.0
      %v454 = vmax.f32 %v430, 0.0
      %v455 = vmax.f32 %v435, 0.0
      %v456 = vmax.f32 %v438, 0.0
      %457 = vst [vmem:[%s175] sm:$0xff] %v441
      %458 = vst [vmem:[%s175 + $0x8] sm:$0xff] %v442
      %459 = vst [vmem:[%s175 + $0x10] sm:$0xff] %v443
      %460 = vst [vmem:[%s175 + $0x18] sm:$0xff] %v444
      %461 = vst [vmem:[%s175 + $0x20] sm:$0xff] %v445
      %462 = vst [vmem:[%s175 + $0x28] sm:$0xff] %v446
      %463 = vst [vmem:[%s175 + $0x30] sm:$0xff] %v447
      %464 = vst [vmem:[%s175 + $0x38] sm:$0xff] %v448
      %465 = vst [vmem:[%s175 + $0x40] sm:$0xff] %v449
      %466 = vst [vmem:[%s175 + $0x48] sm:$0xff] %v450
      %467 = vst [vmem:[%s175 + $0x50] sm:$0xff] %v451
      %468 = vst [vmem:[%s175 + $0x58] sm:$0xff] %v452
      %469 = vst [vmem:[%s175 + $0x60] sm:$0xff] %v453
      %470 = vst [vmem:[%s175 + $0x68] sm:$0xff] %v454
      %471 = vst [vmem:[%s175 + $0x70] sm:$0xff] %v455
      %472 = vst [vmem:[%s175 + $0x78] sm:$0xff] %v456
      %s473 = smul.u32 16, %s14
      %p474 = scmp.lt.s32.totalorder %s473, 31
      %s475 = scalar_select %p474, %s473, 31
      %s476 = smul.addr %s475, 8
      %s477 = scalar_lea.vmem %s3, %s476
      // Predicated region
      $region33: #{gcn_forward_prepared.5} parent=31 // pred_check
        %p478 = pneg %p100
      $region34: #{gcn_forward_prepared.5} parent=31 // pred_check_branch
        %480 = sbr.rel (%p478) target = $region36
      $region35: #{gcn_forward_prepared.5} parent=31 // pred_region
        %s481 = smul.u32 16, %s14
      $region36: #{gcn_forward_prepared.5} parent=31 // pred_fallthru
        _
    $region32: #{gcn_forward_prepared.5} parent=5 // pred_fallthru
      _
    %p482 = scmp.le.s32.totalorder 2, %s9
    // Predicated region
    $region37: #{gcn_forward_prepared.5} parent=5 // pred_check
      %p483 = pneg %p482
    $region38: #{gcn_forward_prepared.5} parent=5 // pred_check_branch
      %485 = sbr.rel (%p483) target = $region40
    $region39: #{gcn_forward_prepared.5} parent=5 // pred_region
      %s486 = ssub.s32 %s9, 2
      // Predicated region
      $region41: #{gcn_forward_prepared.5} parent=39 // pred_check
        %p487 = pneg %p106
      $region42: #{gcn_forward_prepared.5} parent=39 // pred_check_branch
        %489 = sbr.rel (%p487) target = $region44
      $region43: #{gcn_forward_prepared.5} parent=39 // pred_region
        %s490 = smul.u32 16, %s15
        %p491 = scmp.lt.s32.totalorder %s490, 31
        %s492 = scalar_select %p491, %s490, 31
        %s493 = smul.addr %s492, 8
        %s494 = scalar_lea.vmem %s3, %s493
      $region44: #{gcn_forward_prepared.5} parent=39 // pred_fallthru
        _
    $region40: #{gcn_forward_prepared.5} parent=5 // pred_fallthru
      _
  $region6: #{gcn_forward_prepared.5} parent=0 // loop_footer
    %s13 = sadd.s32 1, %s9
  $region7: #{gcn_forward_prepared.5} parent=0 // loop_footer_branch
    %8 = sbr.rel target = $region3
  $region8: #{gcn_forward_prepared.5} parent=0 // loop_exit
    _

// kernel: gcn_forward_prepared.7
$region0: #{gcn_forward_prepared.7}
  #allocation0 [shape = 'u32[]', space=smem, size = 0x4, offset = 0x4, fixed_abs, tag = 'smem constant byte address 0x4 - core index']
  #allocation1 [shape = 'u32[144,128]{1,0:T(1,128)}', space=vmem, size = 0x12000, scoped, tag = 'internal scratch']
  %s0 = inlined_call_operand.vmem [shape: bf16[256,256], index: 0, kind: input, shape index: {}]
  %s1 = inlined_call_operand.vmem [shape: f32[256,128], index: 1, kind: input, shape index: {}]
  %s2 = inlined_call_operand.vmem [shape: f32[1,128], index: 2, kind: input, shape index: {}]
  %s3 = inlined_call_operand.vmem [shape: f32[256,128], index: 3, kind: output, shape index: {}]
  %s4 = sld [smem:[#allocation0]]
  $region45: #{gcn_forward_prepared.7} parent=0
    _
  %s6 = ssub.s32 1, %s4
  %s7 = scalar_select 0, %s6, %s4
  loop: start=0, step=1, limit=4
  $region2: #{gcn_forward_prepared.7} parent=0 // loop_pre_header
    _
  $region3: #{gcn_forward_prepared.7} parent=0 // loop_header
    %s9 = sphi 0, %s13
    %p10 = scmp.ge.s32.totalorder %s9, 4
    %s19 = sphi 0, %s21
    %s22 = sphi 0, %s19
    %s23 = sphi 0, %s22
    %s39 = sphi 0, %s23
    %s43 = sphi 0, %s43
    %s45 = sphi 0, %s43
    %s46 = sphi 0, %s45
    %s60 = sphi 0, %s46
    %s64 = sphi 0, %s64
    %s66 = sphi 0, %s64
    %s67 = sphi 0, %s66
    %s81 = sphi 0, %s67
    %s87 = sphi 0, %s89
    %s90 = sphi 0, %s87
    %s91 = sphi 0, %s90
    %s107 = sphi 0, %s91
  $region4: #{gcn_forward_prepared.7} parent=0 // loop_header_branch
    %12 = sbr.rel (%p10) target = $region8
  $region5: #{gcn_forward_prepared.7} parent=0 // loop_body
    %s14 = ssub.s32 %s9, 1
    %s15 = ssub.s32 %s9, 2
    %s16 = sadd.s32 %s9, 1
    %s17 = ssub.s32 %s9, %s16
    %p18 = scmp.eq.s32.totalorder %s17, 0
    %s20 = sadd.s32 %s19, 1
    %s21 = scalar_select %p18, %s19, %s20
    %p24 = pneg %p18
    %p25 = scmp.eq.s32.totalorder %s9, 1
    %p26 = por %p24, %p25
    %p27 = scmp.ne.s32.totalorder %s19, %s22
    %p28 = scmp.eq.s32.totalorder %s9, 0
    %p29 = por %p27, %p28
    %p30 = scmp.ne.s32.totalorder %s19, %s22
    %p31 = scmp.eq.s32.totalorder %s14, 1
    %p32 = por %p30, %p31
    %p33 = scmp.ne.s32.totalorder %s22, %s23
    %p34 = scmp.eq.s32.totalorder %s14, 0
    %p35 = por %p33, %p34
    %p36 = scmp.ne.s32.totalorder %s22, %s23
    %p37 = scmp.eq.s32.totalorder %s15, 1
    %p38 = por %p36, %p37
    %p40 = scmp.ne.s32.totalorder %s23, %s39
    %p41 = scmp.eq.s32.totalorder %s15, 0
    %p42 = por %p40, %p41
    %s44 = sadd.s32 %s43, 1
    %p47 = scmp.eq.s32.totalorder %s9, 1
    %p48 = scmp.ne.s32.totalorder %s43, %s45
    %p49 = scmp.eq.s32.totalorder %s9, 0
    %p50 = por %p48, %p49
    %p51 = scmp.ne.s32.totalorder %s43, %s45
    %p52 = scmp.eq.s32.totalorder %s14, 1
    %p53 = por %p51, %p52
    %p54 = scmp.ne.s32.totalorder %s45, %s46
    %p55 = scmp.eq.s32.totalorder %s14, 0
    %p56 = por %p54, %p55
    %p57 = scmp.ne.s32.totalorder %s45, %s46
    %p58 = scmp.eq.s32.totalorder %s15, 1
    %p59 = por %p57, %p58
    %p61 = scmp.ne.s32.totalorder %s46, %s60
    %p62 = scmp.eq.s32.totalorder %s15, 0
    %p63 = por %p61, %p62
    %s65 = sadd.s32 %s64, 1
    %p68 = scmp.eq.s32.totalorder %s9, 1
    %p69 = scmp.ne.s32.totalorder %s64, %s66
    %p70 = scmp.eq.s32.totalorder %s9, 0
    %p71 = por %p69, %p70
    %p72 = scmp.ne.s32.totalorder %s64, %s66
    %p73 = scmp.eq.s32.totalorder %s14, 1
    %p74 = por %p72, %p73
    %p75 = scmp.ne.s32.totalorder %s66, %s67
    %p76 = scmp.eq.s32.totalorder %s14, 0
    %p77 = por %p75, %p76
    %p78 = scmp.ne.s32.totalorder %s66, %s67
    %p79 = scmp.eq.s32.totalorder %s15, 1
    %p80 = por %p78, %p79
    %p82 = scmp.ne.s32.totalorder %s67, %s81
    %p83 = scmp.eq.s32.totalorder %s15, 0
    %p84 = por %p82, %p83
    %s85 = ssub.s32 %s9, %s16
    %p86 = scmp.eq.s32.totalorder %s85, 0
    %s88 = sadd.s32 %s87, 1
    %s89 = scalar_select %p86, %s87, %s88
    %p92 = pneg %p86
    %p93 = scmp.eq.s32.totalorder %s9, 1
    %p94 = por %p92, %p93
    %p95 = scmp.ne.s32.totalorder %s87, %s90
    %p96 = scmp.eq.s32.totalorder %s9, 0
    %p97 = por %p95, %p96
    %p98 = scmp.ne.s32.totalorder %s87, %s90
    %p99 = scmp.eq.s32.totalorder %s14, 1
    %p100 = por %p98, %p99
    %p101 = scmp.ne.s32.totalorder %s90, %s91
    %p102 = scmp.eq.s32.totalorder %s14, 0
    %p103 = por %p101, %p102
    %p104 = scmp.ne.s32.totalorder %s90, %s91
    %p105 = scmp.eq.s32.totalorder %s15, 1
    %p106 = por %p104, %p105
    %p108 = scmp.ne.s32.totalorder %s91, %s107
    %p109 = scmp.eq.s32.totalorder %s15, 0
    %p110 = por %p108, %p109
    %p111 = scmp.le.s32.totalorder 1, %s9
    %p112 = scmp.lt.s32.totalorder %s9, 3
    %p113 = pnand %p111, %p112
    %p114 = pneg %p113
    // Predicated region
    $region9: #{gcn_forward_prepared.7} parent=5 // pred_check
      _
    $region10: #{gcn_forward_prepared.7} parent=5 // pred_check_branch
      %116 = sbr.rel (%p113) target = $region12
    $region11: #{gcn_forward_prepared.7} parent=5 // pred_region
      %s117 = ssub.s32 %s9, 1
      // Predicated region
      $region13: #{gcn_forward_prepared.7} parent=11 // pred_check
        %p118 = pneg %p56
      $region14: #{gcn_forward_prepared.7} parent=11 // pred_check_branch
        %120 = sbr.rel (%p118) target = $region16
      $region15: #{gcn_forward_prepared.7} parent=11 // pred_region
        _
      $region16: #{gcn_forward_prepared.7} parent=11 // pred_fallthru
        _
      // Predicated region
      $region17: #{gcn_forward_prepared.7} parent=11 // pred_check
        %p121 = pneg %p77
      $region18: #{gcn_forward_prepared.7} parent=11 // pred_check_branch
        %123 = sbr.rel (%p121) target = $region20
      $region19: #{gcn_forward_prepared.7} parent=11 // pred_region
        _
      $region20: #{gcn_forward_prepared.7} parent=11 // pred_fallthru
        _
    $region12: #{gcn_forward_prepared.7} parent=5 // pred_fallthru
      _
    %p124 = scmp.lt.s32.totalorder %s9, 2
    // Predicated region
    $region21: #{gcn_forward_prepared.7} parent=5 // pred_check
      %p125 = pneg %p124
    $region22: #{gcn_forward_prepared.7} parent=5 // pred_check_branch
      %127 = sbr.rel (%p125) target = $region24
    $region23: #{gcn_forward_prepared.7} parent=5 // pred_region
      // Predicated region
      $region25: #{gcn_forward_prepared.7} parent=23 // pred_check
        %p128 = pneg %p29
      $region26: #{gcn_forward_prepared.7} parent=23 // pred_check_branch
        %130 = sbr.rel (%p128) target = $region28
      $region27: #{gcn_forward_prepared.7} parent=23 // pred_region
        %s131 = smul.u32 16, %s9
        %p132 = scmp.lt.s32.totalorder %s131, 31
        %s133 = scalar_select %p132, %s131, 31
        %s134 = smul.addr %s133, 2
        %s135 = smul.addr %s134, 4
        %s136 = scalar_lea.vmem %s0, %s135
        %s137 = smul.u32 16, %s9
      $region28: #{gcn_forward_prepared.7} parent=23 // pred_fallthru
        _
    $region24: #{gcn_forward_prepared.7} parent=5 // pred_fallthru
      _
    %p138 = scmp.le.s32.totalorder 1, %s9
    %p139 = scmp.lt.s32.totalorder %s9, 3
    %p140 = pnand %p138, %p139
    %p141 = pneg %p140
    // Predicated region
    $region29: #{gcn_forward_prepared.7} parent=5 // pred_check
      _
    $region30: #{gcn_forward_prepared.7} parent=5 // pred_check_branch
      %143 = sbr.rel (%p140) target = $region32
    $region31: #{gcn_forward_prepared.7} parent=5 // pred_region
      %s144 = ssub.s32 %s9, 1
      %s145 = smul.u32 16, %s14
      %p146 = scmp.lt.s32.totalorder %s145, 31
      %s147 = scalar_select %p146, %s145, 31
      %s148 = smul.addr %s147, 2
      %s149 = smul.addr %s148, 4
      %s150 = scalar_lea.vmem %s0, %s149
      %p151 = pneg %p35
      %p152 = pneg %p32
      %p153 = pneg %p56
      %p154 = pneg %p53
      %p155 = pneg %p77
      %p156 = pneg %p74
      %p157 = pneg %p103
      %p158 = pneg %p100
      %s159 = smul.u32 16, %s14
      %p160 = scmp.lt.s32.totalorder %s159, 31
      %s161 = scalar_select %p160, %s159, 31
      %s162 = smul.addr %s161, 8
      %s163 = scalar_lea.vmem %s3, %s162
      %s164 = smul.u32 16, %s14
      %p165 = scmp.lt.s32.totalorder %s164, 31
      %s166 = scalar_select %p165, %s164, 31
      %s167 = smul.addr %s166, 2
      %s168 = smul.addr %s167, 4
      %s169 = scalar_lea.vmem %s0, %s168
      %s170 = smul.u32 16, %s14
      %s171 = smul.u32 16, %s14
      %p172 = scmp.lt.s32.totalorder %s171, 31
      %s173 = scalar_select %p172, %s171, 31
      %s174 = smul.addr %s173, 8
      %s175 = scalar_lea.vmem %s3, %s174
      %s176 = smul.u32 16, %s14
      %v177 = vld [vmem:[%s169] sm:$0xff]
      %v178 = vld [vmem:[%s169 + $0x8] sm:$0xff]
      %v179 = vld [vmem:[%s169 + $0x10] sm:$0xff]
      %v180 = vld [vmem:[%s169 + $0x18] sm:$0xff]
      %v181 = vld [vmem:[%s169 + $0x20] sm:$0xff]
      %v182 = vld [vmem:[%s169 + $0x28] sm:$0xff]
      %v183 = vld [vmem:[%s169 + $0x30] sm:$0xff]
      %v184 = vld [vmem:[%s169 + $0x38] sm:$0xff]
      %v185 = vld [vmem:[%s169 + $0x40] sm:$0xff]
      %v186 = vld [vmem:[%s169 + $0x48] sm:$0xff]
      %v187 = vld [vmem:[%s169 + $0x50] sm:$0xff]
      %v188 = vld [vmem:[%s169 + $0x58] sm:$0xff]
      %v189 = vld [vmem:[%s169 + $0x60] sm:$0xff]
      %v190 = vld [vmem:[%s169 + $0x68] sm:$0xff]
      %v191 = vld [vmem:[%s169 + $0x70] sm:$0xff]
      %v192 = vld [vmem:[%s169 + $0x78] sm:$0xff]
      %v193 = vld [vmem:[%s1] sm:$0xff]
      %v194 = vld [vmem:[%s1 + $0x8] sm:$0xff]
      %v195 = vld [vmem:[%s1 + $0x10] sm:$0xff]
      %v196 = vld [vmem:[%s1 + $0x18] sm:$0xff]
      %v197 = vld [vmem:[%s1 + $0x20] sm:$0xff]
      %v198 = vld [vmem:[%s1 + $0x28] sm:$0xff]
      %v199 = vld [vmem:[%s1 + $0x30] sm:$0xff]
      %v200 = vld [vmem:[%s1 + $0x38] sm:$0xff]
      %v201 = vld [vmem:[%s1 + $0x40] sm:$0xff]
      %v202 = vld [vmem:[%s1 + $0x48] sm:$0xff]
      %v203 = vld [vmem:[%s1 + $0x50] sm:$0xff]
      %v204 = vld [vmem:[%s1 + $0x58] sm:$0xff]
      %v205 = vld [vmem:[%s1 + $0x60] sm:$0xff]
      %v206 = vld [vmem:[%s1 + $0x68] sm:$0xff]
      %v207 = vld [vmem:[%s1 + $0x70] sm:$0xff]
      %v208 = vld [vmem:[%s1 + $0x78] sm:$0xff]
      %v209 = vld [vmem:[%s1 + $0x80] sm:$0xff]
      %v210 = vld [vmem:[%s1 + $0x88] sm:$0xff]
      %v211 = vld [vmem:[%s1 + $0x90] sm:$0xff]
      %v212 = vld [vmem:[%s1 + $0x98] sm:$0xff]
      %v213 = vld [vmem:[%s1 + $0xa0] sm:$0xff]
      %v214 = vld [vmem:[%s1 + $0xa8] sm:$0xff]
      %v215 = vld [vmem:[%s1 + $0xb0] sm:$0xff]
      %v216 = vld [vmem:[%s1 + $0xb8] sm:$0xff]
      %v217 = vld [vmem:[%s1 + $0xc0] sm:$0xff]
      %v218 = vld [vmem:[%s1 + $0xc8] sm:$0xff]
      %v219 = vld [vmem:[%s1 + $0xd0] sm:$0xff]
      %v220 = vld [vmem:[%s1 + $0xd8] sm:$0xff]
      %v221 = vld [vmem:[%s1 + $0xe0] sm:$0xff]
      %v222 = vld [vmem:[%s1 + $0xe8] sm:$0xff]
      %v223 = vld [vmem:[%s1 + $0xf0] sm:$0xff]
      %v224 = vld [vmem:[%s1 + $0xf8] sm:$0xff]
      %v225 = vld [vmem:[%s2] sm:$0x1]
      %v227 = vlaneseq
      %v228 = vshrl.u32 %v227, 7
      %v229 = vsub.s32 0, %v228
      %v230 = vrot.slane %v225, %v229
      %v248 = vunpack.c.l.b16 %v177
      %v249 = vunpack.c.h.b16 %v177
      %v250 = vunpack.c.l.b16 %v178
      %v251 = vunpack.c.h.b16 %v178
      %v252 = vunpack.c.l.b16 %v179
      %v253 = vunpack.c.h.b16 %v179
      %v254 = vunpack.c.l.b16 %v180
      %v255 = vunpack.c.h.b16 %v180
      %v256 = vunpack.c.l.b16 %v181
      %v257 = vunpack.c.h.b16 %v181
      %v258 = vunpack.c.l.b16 %v182
      %v259 = vunpack.c.h.b16 %v182
      %v260 = vunpack.c.l.b16 %v183
      %v261 = vunpack.c.h.b16 %v183
      %v262 = vunpack.c.l.b16 %v184
      %v263 = vunpack.c.h.b16 %v184
      %v264 = vunpack.c.l.b16 %v185
      %v265 = vunpack.c.h.b16 %v185
      %v266 = vunpack.c.l.b16 %v186
      %v267 = vunpack.c.h.b16 %v186
      %v268 = vunpack.c.l.b16 %v187
      %v269 = vunpack.c.h.b16 %v187
      %v270 = vunpack.c.l.b16 %v188
      %v271 = vunpack.c.h.b16 %v188
      %v272 = vunpack.c.l.b16 %v189
      %v273 = vunpack.c.h.b16 %v189
      %v274 = vunpack.c.l.b16 %v190
      %v275 = vunpack.c.h.b16 %v190
      %v276 = vunpack.c.l.b16 %v191
      %v277 = vunpack.c.h.b16 %v191
      %v278 = vunpack.c.l.b16 %v192
      %v279 = vunpack.c.h.b16 %v192
      %v280 = vpack.c.b16 %v250, %v248
      %v281 = vpack.c.b16 %v251, %v249
      %v282 = vpack.c.b16 %v254, %v252
      %v283 = vpack.c.b16 %v255, %v253
      %v284 = vpack.c.b16 %v258, %v256
      %v285 = vpack.c.b16 %v259, %v257
      %v286 = vpack.c.b16 %v262, %v260
      %v287 = vpack.c.b16 %v263, %v261
      %v288 = vpack.c.b16 %v266, %v264
      %v289 = vpack.c.b16 %v267, %v265
      %v290 = vpack.c.b16 %v270, %v268
      %v291 = vpack.c.b16 %v271, %v269
      %v292 = vpack.c.b16 %v274, %v272
      %v293 = vpack.c.b16 %v275, %v273
      %v294 = vpack.c.b16 %v278, %v276
      %v295 = vpack.c.b16 %v279, %v277
      %312 = vmatprep.subr.mxu0 0.0
      %313 = vmatpush1.msra.mxu0 %v193
      %314 = vmatprep.subr.mxu0 0.0
      %315 = vmatpush1.msra.mxu0 %v194
      %316 = vmatprep.subr.mxu0 0.0
      %317 = vmatpush1.msra.mxu0 %v195
      %318 = vmatprep.subr.mxu0 0.0
      %319 = vmatpush1.msra.mxu0 %v196
      %320 = vmatprep.subr.mxu0 0.0
      %321 = vmatpush1.msra.mxu0 %v197
      %322 = vmatprep.subr.mxu0 0.0
      %323 = vmatpush1.msra.mxu0 %v198
      %324 = vmatprep.subr.mxu0 0.0
      %325 = vmatpush1.msra.mxu0 %v199
      %326 = vmatprep.subr.mxu0 0.0
      %327 = vmatpush1.msra.mxu0 %v200
      %328 = vmatprep.subr.mxu0 0.0
      %329 = vmatpush1.msra.mxu0 %v201
      %330 = vmatprep.subr.mxu0 0.0
      %331 = vmatpush1.msra.mxu0 %v202
      %332 = vmatprep.subr.mxu0 0.0
      %333 = vmatpush1.msra.mxu0 %v203
      %334 = vmatprep.subr.mxu0 0.0
      %335 = vmatpush1.msra.mxu0 %v204
      %336 = vmatprep.subr.mxu0 0.0
      %337 = vmatpush1.msra.mxu0 %v205
      %338 = vmatprep.subr.mxu0 0.0
      %339 = vmatpush1.msra.mxu0 %v206
      %340 = vmatprep.subr.mxu0 0.0
      %341 = vmatpush1.msra.mxu0 %v207
      %342 = vmatprep.subr.mxu0 0.0
      %343 = vmatpush1.msra.mxu0 %v208
      %344 = vmatprep.subr.mxu0 0.0
      %345 = vmatpush1.msra.mxu0 %v209
      %346 = vmatprep.subr.mxu0 0.0
      %347 = vmatpush1.msra.mxu0 %v210
      %348 = vmatprep.subr.mxu0 0.0
      %349 = vmatpush1.msra.mxu0 %v211
      %350 = vmatprep.subr.mxu0 0.0
      %351 = vmatpush1.msra.mxu0 %v212
      %352 = vmatprep.subr.mxu0 0.0
      %353 = vmatpush1.msra.mxu0 %v213
      %354 = vmatprep.subr.mxu0 0.0
      %355 = vmatpush1.msra.mxu0 %v214
      %356 = vmatprep.subr.mxu0 0.0
      %357 = vmatpush1.msra.mxu0 %v215
      %358 = vmatprep.subr.mxu0 0.0
      %359 = vmatpush1.msra.mxu0 %v216
      %360 = vmatprep.subr.mxu0 0.0
      %361 = vmatpush1.msra.mxu0 %v217
      %362 = vmatprep.subr.mxu0 0.0
      %363 = vmatpush1.msra.mxu0 %v218
      %364 = vmatprep.subr.mxu0 0.0
      %365 = vmatpush1.msra.mxu0 %v219
      %366 = vmatprep.subr.mxu0 0.0
      %367 = vmatpush1.msra.mxu0 %v220
      %368 = vmatprep.subr.mxu0 0.0
      %369 = vmatpush1.msra.mxu0 %v221
      %370 = vmatprep.subr.mxu0 0.0
      %371 = vmatpush1.msra.mxu0 %v222
      %372 = vmatprep.subr.mxu0 0.0
      %373 = vmatpush1.msra.mxu0 %v223
      %374 = vmatprep.subr.mxu0 0.0
      %375 = vmatpush1.msra.mxu0 %v224
      %376 = vmatprep.mubr.bf16.mxu0 %v281
      %377 = vmatmul.mubr.bf16.gmra.mrb[0].mxu0 %v280
      %v378 = vpop.f32.mrb[0].mxu0
      %v379 = vadd.f32 %v230, %v378
      %v380 = vpop.f32.mrb[0].mxu0
      %v381 = vpop.f32.mrb[0].mxu0
      %v382 = vadd.f32 %v230, %v381
      %v383 = vpop.f32.mrb[0].mxu0
      %384 = vmatprep.mubr.bf16.mxu0 %v283
      %385 = vmatmul.mubr.bf16.gmra.mrb[0].mxu0 %v282
      %v386 = vpop.f32.mrb[0].mxu0
      %v387 = vadd.f32 %v230, %v386
      %v388 = vpop.f32.mrb[0].mxu0
      %v389 = vpop.f32.mrb[0].mxu0
      %v390 = vadd.f32 %v230, %v389
      %v391 = vpop.f32.mrb[0].mxu0
      %392 = vmatprep.mubr.bf16.mxu0 %v285
      %393 = vmatmul.mubr.bf16.gmra.mrb[0].mxu0 %v284
      %v394 = vpop.f32.mrb[0].mxu0
      %v395 = vadd.f32 %v230, %v394
      %v396 = vpop.f32.mrb[0].mxu0
      %v397 = vpop.f32.mrb[0].mxu0
      %v398 = vadd.f32 %v230, %v397
      %v399 = vpop.f32.mrb[0].mxu0
      %400 = vmatprep.mubr.bf16.mxu0 %v287
      %401 = vmatmul.mubr.bf16.gmra.mrb[0].mxu0 %v286
      %v402 = vpop.f32.mrb[0].mxu0
      %v403 = vadd.f32 %v230, %v402
      %v404 = vpop.f32.mrb[0].mxu0
      %v405 = vpop.f32.mrb[0].mxu0
      %v406 = vadd.f32 %v230, %v405
      %v407 = vpop.f32.mrb[0].mxu0
      %408 = vmatprep.mubr.bf16.mxu0 %v289
      %409 = vmatmul.mubr.bf16.gmra.mrb[0].mxu0 %v288
      %v410 = vpop.f32.mrb[0].mxu0
      %v411 = vadd.f32 %v230, %v410
      %v412 = vpop.f32.mrb[0].mxu0
      %v413 = vpop.f32.mrb[0].mxu0
      %v414 = vadd.f32 %v230, %v413
      %v415 = vpop.f32.mrb[0].mxu0
      %416 = vmatprep.mubr.bf16.mxu0 %v291
      %417 = vmatmul.mubr.bf16.gmra.mrb[0].mxu0 %v290
      %v418 = vpop.f32.mrb[0].mxu0
      %v419 = vadd.f32 %v230, %v418
      %v420 = vpop.f32.mrb[0].mxu0
      %v421 = vpop.f32.mrb[0].mxu0
      %v422 = vadd.f32 %v230, %v421
      %v423 = vpop.f32.mrb[0].mxu0
      %424 = vmatprep.mubr.bf16.mxu0 %v293
      %425 = vmatmul.mubr.bf16.gmra.mrb[0].mxu0 %v292
      %v426 = vpop.f32.mrb[0].mxu0
      %v427 = vadd.f32 %v230, %v426
      %v428 = vpop.f32.mrb[0].mxu0
      %v429 = vpop.f32.mrb[0].mxu0
      %v430 = vadd.f32 %v230, %v429
      %v431 = vpop.f32.mrb[0].mxu0
      %432 = vmatprep.mubr.bf16.mxu0 %v295
      %433 = vmatmul.mubr.bf16.gmra.mrb[0].mxu0 %v294
      %v434 = vpop.f32.mrb[0].mxu0
      %v435 = vadd.f32 %v230, %v434
      %v436 = vpop.f32.mrb[0].mxu0
      %v437 = vpop.f32.mrb[0].mxu0
      %v438 = vadd.f32 %v230, %v437
      %v439 = vpop.f32.mrb[0].mxu0
      %440 = vdwg.mxu0
      %v441 = vlaneseq
      %v442 = vand.u32 %v441, 127
      %vm443 = vcmp.lt.s32.totalorder %v442, 8
      %v444 = vsel %vm443, %v379, -inf
      %v445 = vsel %vm443, %v382, -inf
      %v446 = vsel %vm443, %v387, -inf
      %v447 = vsel %vm443, %v390, -inf
      %v448 = vsel %vm443, %v395, -inf
      %v449 = vsel %vm443, %v398, -inf
      %v450 = vsel %vm443, %v403, -inf
      %v451 = vsel %vm443, %v406, -inf
      %v452 = vsel %vm443, %v411, -inf
      %v453 = vsel %vm443, %v414, -inf
      %v454 = vsel %vm443, %v419, -inf
      %v455 = vsel %vm443, %v422, -inf
      %v456 = vsel %vm443, %v427, -inf
      %v457 = vsel %vm443, %v430, -inf
      %v458 = vsel %vm443, %v435, -inf
      %v459 = vsel %vm443, %v438, -inf
      %460 = vmax.xlane.f32.xlu0 %v444
      %v461 = vpop.xlane.xlu0 %460
      %462 = vmax.xlane.f32.xlu0 %v445
      %v463 = vpop.xlane.xlu0 %462
      %464 = vmax.xlane.f32.xlu0 %v446
      %v465 = vpop.xlane.xlu0 %464
      %466 = vmax.xlane.f32.xlu0 %v447
      %v467 = vpop.xlane.xlu0 %466
      %468 = vmax.xlane.f32.xlu0 %v448
      %v469 = vpop.xlane.xlu0 %468
      %470 = vmax.xlane.f32.xlu0 %v449
      %v471 = vpop.xlane.xlu0 %470
      %472 = vmax.xlane.f32.xlu0 %v450
      %v473 = vpop.xlane.xlu0 %472
      %474 = vmax.xlane.f32.xlu0 %v451
      %v475 = vpop.xlane.xlu0 %474
      %476 = vmax.xlane.f32.xlu0 %v452
      %v477 = vpop.xlane.xlu0 %476
      %478 = vmax.xlane.f32.xlu0 %v453
      %v479 = vpop.xlane.xlu0 %478
      %480 = vmax.xlane.f32.xlu0 %v454
      %v481 = vpop.xlane.xlu0 %480
      %482 = vmax.xlane.f32.xlu0 %v455
      %v483 = vpop.xlane.xlu0 %482
      %484 = vmax.xlane.f32.xlu0 %v456
      %v485 = vpop.xlane.xlu0 %484
      %486 = vmax.xlane.f32.xlu0 %v457
      %v487 = vpop.xlane.xlu0 %486
      %488 = vmax.xlane.f32.xlu0 %v458
      %v489 = vpop.xlane.xlu0 %488
      %490 = vmax.xlane.f32.xlu0 %v459
      %v491 = vpop.xlane.xlu0 %490
      %v492 = vsub.f32 %v444, %v461
      %v493 = vsub.f32 %v445, %v463
      %v494 = vsub.f32 %v446, %v465
      %v495 = vsub.f32 %v447, %v467
      %v496 = vsub.f32 %v448, %v469
      %v497 = vsub.f32 %v449, %v471
      %v498 = vsub.f32 %v450, %v473
      %v499 = vsub.f32 %v451, %v475
      %v500 = vsub.f32 %v452, %v477
      %v501 = vsub.f32 %v453, %v479
      %v502 = vsub.f32 %v454, %v481
      %v503 = vsub.f32 %v455, %v483
      %v504 = vsub.f32 %v456, %v485
      %v505 = vsub.f32 %v457, %v487
      %v506 = vsub.f32 %v458, %v489
      %v507 = vsub.f32 %v459, %v491
      %v508 = vmul.f32 %v492, 1.442695
      %v509 = vpow.pop %v508
      %v510 = vmul.f32 %v493, 1.442695
      %v511 = vpow.pop %v510
      %v512 = vmul.f32 %v494, 1.442695
      %v513 = vpow.pop %v512
      %v514 = vmul.f32 %v495, 1.442695
      %v515 = vpow.pop %v514
      %v516 = vmul.f32 %v496, 1.442695
      %v517 = vpow.pop %v516
      %v518 = vmul.f32 %v497, 1.442695
      %v519 = vpow.pop %v518
      %v520 = vmul.f32 %v498, 1.442695
      %v521 = vpow.pop %v520
      %v522 = vmul.f32 %v499, 1.442695
      %v523 = vpow.pop %v522
      %v524 = vmul.f32 %v500, 1.442695
      %v525 = vpow.pop %v524
      %v526 = vmul.f32 %v501, 1.442695
      %v527 = vpow.pop %v526
      %v528 = vmul.f32 %v502, 1.442695
      %v529 = vpow.pop %v528
      %v530 = vmul.f32 %v503, 1.442695
      %v531 = vpow.pop %v530
      %v532 = vmul.f32 %v504, 1.442695
      %v533 = vpow.pop %v532
      %v534 = vmul.f32 %v505, 1.442695
      %v535 = vpow.pop %v534
      %v536 = vmul.f32 %v506, 1.442695
      %v537 = vpow.pop %v536
      %v538 = vmul.f32 %v507, 1.442695
      %v539 = vpow.pop %v538
      %540 = vadd.xlane.f32.xlu0 %v509
      %v541 = vpop.xlane.xlu0 %540
      %542 = vadd.xlane.f32.xlu0 %v511
      %v543 = vpop.xlane.xlu0 %542
      %544 = vadd.xlane.f32.xlu0 %v513
      %v545 = vpop.xlane.xlu0 %544
      %546 = vadd.xlane.f32.xlu0 %v515
      %v547 = vpop.xlane.xlu0 %546
      %548 = vadd.xlane.f32.xlu0 %v517
      %v549 = vpop.xlane.xlu0 %548
      %550 = vadd.xlane.f32.xlu0 %v519
      %v551 = vpop.xlane.xlu0 %550
      %552 = vadd.xlane.f32.xlu0 %v521
      %v553 = vpop.xlane.xlu0 %552
      %554 = vadd.xlane.f32.xlu0 %v523
      %v555 = vpop.xlane.xlu0 %554
      %556 = vadd.xlane.f32.xlu0 %v525
      %v557 = vpop.xlane.xlu0 %556
      %558 = vadd.xlane.f32.xlu0 %v527
      %v559 = vpop.xlane.xlu0 %558
      %560 = vadd.xlane.f32.xlu0 %v529
      %v561 = vpop.xlane.xlu0 %560
      %562 = vadd.xlane.f32.xlu0 %v531
      %v563 = vpop.xlane.xlu0 %562
      %564 = vadd.xlane.f32.xlu0 %v533
      %v565 = vpop.xlane.xlu0 %564
      %566 = vadd.xlane.f32.xlu0 %v535
      %v567 = vpop.xlane.xlu0 %566
      %568 = vadd.xlane.f32.xlu0 %v537
      %v569 = vpop.xlane.xlu0 %568
      %570 = vadd.xlane.f32.xlu0 %v539
      %v571 = vpop.xlane.xlu0 %570
      %v572 = vlog2.pop %v541
      %v573 = vmul.f32 %v572, 0.6931472
      %v574 = vlog2.pop %v543
      %v575 = vmul.f32 %v574, 0.6931472
      %v576 = vlog2.pop %v545
      %v577 = vmul.f32 %v576, 0.6931472
      %v578 = vlog2.pop %v547
      %v579 = vmul.f32 %v578, 0.6931472
      %v580 = vlog2.pop %v549
      %v581 = vmul.f32 %v580, 0.6931472
      %v582 = vlog2.pop %v551
      %v583 = vmul.f32 %v582, 0.6931472
      %v584 = vlog2.pop %v553
      %v585 = vmul.f32 %v584, 0.6931472
      %v586 = vlog2.pop %v555
      %v587 = vmul.f32 %v586, 0.6931472
      %v588 = vlog2.pop %v557
      %v589 = vmul.f32 %v588, 0.6931472
      %v590 = vlog2.pop %v559
      %v591 = vmul.f32 %v590, 0.6931472
      %v592 = vlog2.pop %v561
      %v593 = vmul.f32 %v592, 0.6931472
      %v594 = vlog2.pop %v563
      %v595 = vmul.f32 %v594, 0.6931472
      %v596 = vlog2.pop %v565
      %v597 = vmul.f32 %v596, 0.6931472
      %v598 = vlog2.pop %v567
      %v599 = vmul.f32 %v598, 0.6931472
      %v600 = vlog2.pop %v569
      %v601 = vmul.f32 %v600, 0.6931472
      %v602 = vlog2.pop %v571
      %v603 = vmul.f32 %v602, 0.6931472
      %v604 = vsub.f32 %v492, %v573
      %v605 = vsub.f32 %v493, %v575
      %v606 = vsub.f32 %v494, %v577
      %v607 = vsub.f32 %v495, %v579
      %v608 = vsub.f32 %v496, %v581
      %v609 = vsub.f32 %v497, %v583
      %v610 = vsub.f32 %v498, %v585
      %v611 = vsub.f32 %v499, %v587
      %v612 = vsub.f32 %v500, %v589
      %v613 = vsub.f32 %v501, %v591
      %v614 = vsub.f32 %v502, %v593
      %v615 = vsub.f32 %v503, %v595
      %v616 = vsub.f32 %v504, %v597
      %v617 = vsub.f32 %v505, %v599
      %v618 = vsub.f32 %v506, %v601
      %v619 = vsub.f32 %v507, %v603
      %v620 = vsel %vm443, %v604, 0.0
      %v621 = vsel %vm443, %v605, 0.0
      %v622 = vsel %vm443, %v606, 0.0
      %v623 = vsel %vm443, %v607, 0.0
      %v624 = vsel %vm443, %v608, 0.0
      %v625 = vsel %vm443, %v609, 0.0
      %v626 = vsel %vm443, %v610, 0.0
      %v627 = vsel %vm443, %v611, 0.0
      %v628 = vsel %vm443, %v612, 0.0
      %v629 = vsel %vm443, %v613, 0.0
      %v630 = vsel %vm443, %v614, 0.0
      %v631 = vsel %vm443, %v615, 0.0
      %v632 = vsel %vm443, %v616, 0.0
      %v633 = vsel %vm443, %v617, 0.0
      %v634 = vsel %vm443, %v618, 0.0
      %v635 = vsel %vm443, %v619, 0.0
      %636 = vst [vmem:[%s175] sm:$0xff] %v620
      %637 = vst [vmem:[%s175 + $0x8] sm:$0xff] %v621
      %638 = vst [vmem:[%s175 + $0x10] sm:$0xff] %v622
      %639 = vst [vmem:[%s175 + $0x18] sm:$0xff] %v623
      %640 = vst [vmem:[%s175 + $0x20] sm:$0xff] %v624
      %641 = vst [vmem:[%s175 + $0x28] sm:$0xff] %v625
      %642 = vst [vmem:[%s175 + $0x30] sm:$0xff] %v626
      %643 = vst [vmem:[%s175 + $0x38] sm:$0xff] %v627
      %644 = vst [vmem:[%s175 + $0x40] sm:$0xff] %v628
      %645 = vst [vmem:[%s175 + $0x48] sm:$0xff] %v629
      %646 = vst [vmem:[%s175 + $0x50] sm:$0xff] %v630
      %647 = vst [vmem:[%s175 + $0x58] sm:$0xff] %v631
      %648 = vst [vmem:[%s175 + $0x60] sm:$0xff] %v632
      %649 = vst [vmem:[%s175 + $0x68] sm:$0xff] %v633
      %650 = vst [vmem:[%s175 + $0x70] sm:$0xff] %v634
      %651 = vst [vmem:[%s175 + $0x78] sm:$0xff] %v635
      %s652 = smul.u32 16, %s14
      %p653 = scmp.lt.s32.totalorder %s652, 31
      %s654 = scalar_select %p653, %s652, 31
      %s655 = smul.addr %s654, 8
      %s656 = scalar_lea.vmem %s3, %s655
      // Predicated region
      $region33: #{gcn_forward_prepared.7} parent=31 // pred_check
        %p657 = pneg %p100
      $region34: #{gcn_forward_prepared.7} parent=31 // pred_check_branch
        %659 = sbr.rel (%p657) target = $region36
      $region35: #{gcn_forward_prepared.7} parent=31 // pred_region
        %s660 = smul.u32 16, %s14
      $region36: #{gcn_forward_prepared.7} parent=31 // pred_fallthru
        _
    $region32: #{gcn_forward_prepared.7} parent=5 // pred_fallthru
      _
    %p661 = scmp.le.s32.totalorder 2, %s9
    // Predicated region
    $region37: #{gcn_forward_prepared.7} parent=5 // pred_check
      %p662 = pneg %p661
    $region38: #{gcn_forward_prepared.7} parent=5 // pred_check_branch
      %664 = sbr.rel (%p662) target = $region40
    $region39: #{gcn_forward_prepared.7} parent=5 // pred_region
      %s665 = ssub.s32 %s9, 2
      // Predicated region
      $region41: #{gcn_forward_prepared.7} parent=39 // pred_check
        %p666 = pneg %p106
      $region42: #{gcn_forward_prepared.7} parent=39 // pred_check_branch
        %668 = sbr.rel (%p666) target = $region44
      $region43: #{gcn_forward_prepared.7} parent=39 // pred_region
        %s669 = smul.u32 16, %s15
        %p670 = scmp.lt.s32.totalorder %s669, 31
        %s671 = scalar_select %p670, %s669, 31
        %s672 = smul.addr %s671, 8
        %s673 = scalar_lea.vmem %s3, %s672
      $region44: #{gcn_forward_prepared.7} parent=39 // pred_fallthru
        _
    $region40: #{gcn_forward_prepared.7} parent=5 // pred_fallthru
      _
  $region6: #{gcn_forward_prepared.7} parent=0 // loop_footer
    %s13 = sadd.s32 1, %s9
  $region7: #{gcn_forward_prepared.7} parent=0 // loop_footer_branch
    %8 = sbr.rel target = $region3
  $region8: #{gcn_forward_prepared.7} parent=0 // loop_exit
    _

</llo_original>
